<compile_context>
chip_gen: v7x
topology: tpu7x:2x2x1
jax: 0.10.0
libtpu: 0.0.40
codegen_flags: <defaults>
</compile_context>

<pallas_src>
import functools

import jax
import jax.numpy as jnp
import numpy as np
from jax.experimental import pallas as pl
from jax.experimental.pallas import tpu as pltpu


# ---------------------------------------------------------------------------
# Fused forward kernel.
# grid = (B, NT): b = image ("parallel"), t = spatial row-chunk ("arbitrary").
# The padded image block is grid-invariant across t (DMA'd once per image).
# ---------------------------------------------------------------------------
def _fused_kernel(x_ref, mask_ref, wk_ref, bconv_ref, wproj_ref, bproj_ref,
                  wcls_ref, bcls_ref, logits_ref, proj_ref, pooled_ref,
                  *, shifts, guard, chunk_rows, inv_hw):
    t = pl.program_id(1)

    @pl.when(t == 0)
    def _init():
        pooled_ref[...] = jnp.zeros_like(pooled_ref)

    # ----- encoder: 3x3 conv over this chunk of (flattened, padded) rows -----
    q0 = t * chunk_rows
    # In-VMEM im2col: 9 shifted row-windows of the resident padded image,
    # concatenated on the lane axis -> one MXU matmul with K = 9*Cin.
    taps = [x_ref[0, pl.ds(guard + q0 + s, chunk_rows), :] for s in shifts]
    patch = jnp.concatenate(taps, axis=-1)                        # [CH, 9*Cin]
    conv = jnp.dot(patch, wk_ref[...], preferred_element_type=jnp.float32)
    conv = jnp.maximum(conv + bconv_ref[...], 0.0)                # [CH, Cenc]

    # ----- global average pool: masked partial row-sum (no pooling matmul) ---
    pooled_ref[...] += jnp.sum(conv * mask_ref[...], axis=0, keepdims=True)

    # ----- projector + classifier: once per image, on the last chunk only ----
    @pl.when(t == pl.num_programs(1) - 1)
    def _finalize():
        feat = pooled_ref[...] * inv_hw                           # [1, Cenc]
        proj = jnp.dot(feat, wproj_ref[...],
                       preferred_element_type=jnp.float32) + bproj_ref[...]
        logits = jnp.dot(proj, wcls_ref[...],
                         preferred_element_type=jnp.float32) + bcls_ref[...]
        proj_ref[...] = proj[None]                                # [1,1,Dproj]
        logits_ref[...] = logits[None]                            # [1,1,Nclass]


def model_wrapper_forward(x, params, *, chunk_rows=128):
    """x: [B, Cin, H, W] float32 (NCHW). Returns (logits, projected_features).

    chunk_rows: rows of the flattened padded image processed per grid step.
    128 keeps the toy test multi-step; at production sizes pick 512-2048
    (sized so the per-chunk conv intermediate + double-buffered inputs stay
    well under the 16/32 MiB scoped-VMEM defaults on v5e / v6e-v7x).
    """
    B, Cin, H, W = x.shape
    w_conv, b_conv, w_proj, b_proj, w_cls, b_cls = params
    Cenc = w_conv.shape[0]
    Dproj = w_proj.shape[1]
    Nclass = w_cls.shape[1]

    Hp, Wp = H + 2, W + 2
    P = Hp * Wp                      # flattened padded image length
    G = Wp + 1                       # guard rows: every tap-shifted read stays in range
    CH = max(8, ((min(chunk_rows, P) + 7) // 8) * 8)
    NT = -(-P // CH)                 # cdiv
    Pc = NT * CH
    L = Pc + 2 * G

    # Host-side glue (layout only, ~1.1x the raw input bytes — no 9x im2col):
    # NCHW -> NHWC, zero-pad spatially, flatten spatial, add guard rows.
    x_nhwc = jnp.transpose(x, (0, 2, 3, 1))                       # [B,H,W,Cin]
    x_pad = jnp.pad(x_nhwc, ((0, 0), (1, 1), (1, 1), (0, 0)))     # [B,Hp,Wp,Cin]
    x_buf = jnp.pad(x_pad.reshape(B, P, Cin),
                    ((0, 0), (G, Pc - P + G), (0, 0)))            # [B,L,Cin]

    # Pooling-validity mask over the Pc computed rows (real pixels only).
    q = np.arange(Pc)
    hh, ww = q // Wp, q % Wp
    mask_np = ((q < P) & (hh >= 1) & (hh <= H) & (ww >= 1) & (ww <= W))
    mask = jnp.asarray(mask_np.astype(np.float32).reshape(Pc, 1))

    # Tap shifts and tap-major flattened conv weight [9*Cin, Cenc].
    shifts = tuple((ki - 1) * Wp + (kj - 1) for ki in range(3) for kj in range(3))
    wk = jnp.transpose(w_conv, (2, 3, 1, 0)).reshape(9 * Cin, Cenc)

    kernel = functools.partial(_fused_kernel, shifts=shifts, guard=G,
                               chunk_rows=CH, inv_hw=1.0 / (H * W))

    const = lambda b, t: (0, 0)      # grid-invariant weights/biases: fetched once

    logits3, proj3 = pl.pallas_call(
        kernel,
        out_shape=(jax.ShapeDtypeStruct((B, 1, Nclass), jnp.float32),
                   jax.ShapeDtypeStruct((B, 1, Dproj), jnp.float32)),
        grid_spec=pltpu.PrefetchScalarGridSpec(
            num_scalar_prefetch=0,
            grid=(B, NT),
            in_specs=[
                pl.BlockSpec((1, L, Cin), lambda b, t: (b, 0, 0)),  # image, resident per b
                pl.BlockSpec((CH, 1), lambda b, t: (t, 0)),         # per-chunk pool mask
                pl.BlockSpec((9 * Cin, Cenc), const),                # conv weight (tap-major)
                pl.BlockSpec((1, Cenc), const),                      # conv bias
                pl.BlockSpec((Cenc, Dproj), const),                  # projector weight
                pl.BlockSpec((1, Dproj), const),                     # projector bias
                pl.BlockSpec((Dproj, Nclass), const),                # classifier weight
                pl.BlockSpec((1, Nclass), const),                    # classifier bias
            ],
            out_specs=(pl.BlockSpec((1, 1, Nclass), lambda b, t: (b, 0, 0)),
                       pl.BlockSpec((1, 1, Dproj), lambda b, t: (b, 0, 0))),
            scratch_shapes=[pltpu.VMEM((1, Cenc), jnp.float32)],     # pooled accumulator
        ),
        compiler_params=pltpu.CompilerParams(
            dimension_semantics=("parallel", "arbitrary"),
            vmem_limit_bytes=32 * 1024 * 1024),
    )(x_buf, mask, wk,
      b_conv.reshape(1, Cenc), w_proj, b_proj.reshape(1, Dproj),
      w_cls, b_cls.reshape(1, Nclass))

    return logits3.reshape(B, Nclass), proj3.reshape(B, Dproj)


# ---------------------------------------------------------------------------
# Pure-JAX reference (same semantics as the PyTorch module instantiation)
# ---------------------------------------------------------------------------
def reference_forward(x, params):
    w_conv, b_conv, w_proj, b_proj, w_cls, b_cls = params
    conv = jax.lax.conv_general_dilated(
        x, w_conv, window_strides=(1, 1), padding="SAME",
        dimension_numbers=("NCHW", "OIHW", "NCHW"))
    conv = jax.nn.relu(conv + b_conv[None, :, None, None])
    feat = jnp.mean(conv, axis=(2, 3))                 # global avg pool -> [B, Cenc]
    proj = feat @ w_proj + b_proj
    logits = proj @ w_cls + b_cls
    return logits, proj


if __name__ == "__main__":
    B, Cin, H, W = 2, 4, 16, 16
    Cenc, Dproj, Nclass = 8, 128, 16

    key = jax.random.PRNGKey(0)
    kx, k1, k2, k3 = jax.random.split(key, 4)

    x = jax.random.normal(kx, (B, Cin, H, W), dtype=jnp.float32)

    # Deterministic parameter init (synthetic, not a checkpoint).
    w_conv = 0.1 * jax.random.normal(k1, (Cenc, Cin, 3, 3), dtype=jnp.float32)  # OIHW
    b_conv = jnp.linspace(-0.1, 0.1, Cenc, dtype=jnp.float32)
    w_proj = 0.1 * jax.random.normal(k2, (Cenc, Dproj), dtype=jnp.float32)
    b_proj = jnp.linspace(-0.05, 0.05, Dproj, dtype=jnp.float32)
    w_cls = 0.1 * jax.random.normal(k3, (Dproj, Nclass), dtype=jnp.float32)
    b_cls = jnp.linspace(-0.02, 0.02, Nclass, dtype=jnp.float32)

    params = (w_conv, b_conv, w_proj, b_proj, w_cls, b_cls)

    logits, proj = jax.block_until_ready(model_wrapper_forward(x, params))
    logits_ref, proj_ref = reference_forward(x, params)

    np.testing.assert_allclose(np.asarray(logits), np.asarray(logits_ref),
                               rtol=1e-4, atol=1e-5)
    np.testing.assert_allclose(np.asarray(proj), np.asarray(proj_ref),
                               rtol=1e-4, atol=1e-5)

    print("KERNEL_OK")
</pallas_src>

<mosaic_0001>
module attributes {stable_mosaic.version = 11 : i64} {
  func.func @_fused_kernel(%arg0: i32, %arg1: i32, %arg2: memref<1x422x4xf32, #tpu.memory_space<vmem>>, %arg3: memref<128x1xf32, #tpu.memory_space<vmem>>, %arg4: memref<36x8xf32, #tpu.memory_space<vmem>>, %arg5: memref<1x8xf32, #tpu.memory_space<vmem>>, %arg6: memref<8x128xf32, #tpu.memory_space<vmem>>, %arg7: memref<1x128xf32, #tpu.memory_space<vmem>>, %arg8: memref<128x16xf32, #tpu.memory_space<vmem>>, %arg9: memref<1x16xf32, #tpu.memory_space<vmem>>, %arg10: memref<1x1x16xf32, #tpu.memory_space<vmem>>, %arg11: memref<1x1x128xf32, #tpu.memory_space<vmem>>, %arg12: memref<1x8xf32, #tpu.memory_space<vmem>>) attributes {dimension_semantics = [#tpu.dimension_semantics<parallel>, #tpu.dimension_semantics<arbitrary>], iteration_bounds = array<i64: 2, 3>, scalar_prefetch = 0 : i64, scratch_operands = 1 : i64, tpu.core_type = #tpu.core_type<tc>, window_params = [{transform_indices = @transform_0, window_bounds = array<i64: 1, 422, 4>}, {transform_indices = @transform_1, window_bounds = array<i64: 128, 1>}, {pipeline_mode = #tpu.pipeline_mode<synchronous>, transform_indices = @transform_2, window_bounds = array<i64: 36, 8>}, {pipeline_mode = #tpu.pipeline_mode<synchronous>, transform_indices = @transform_3, window_bounds = array<i64: 1, 8>}, {pipeline_mode = #tpu.pipeline_mode<synchronous>, transform_indices = @transform_4, window_bounds = array<i64: 8, 128>}, {pipeline_mode = #tpu.pipeline_mode<synchronous>, transform_indices = @transform_5, window_bounds = array<i64: 1, 128>}, {pipeline_mode = #tpu.pipeline_mode<synchronous>, transform_indices = @transform_6, window_bounds = array<i64: 128, 16>}, {pipeline_mode = #tpu.pipeline_mode<synchronous>, transform_indices = @transform_7, window_bounds = array<i64: 1, 16>}, {transform_indices = @transform_8, window_bounds = array<i64: 1, 1, 16>}, {transform_indices = @transform_9, window_bounds = array<i64: 1, 1, 128>}]} {
    %c0_i32 = arith.constant 0 : i32
    %0 = arith.cmpi eq, %arg1, %c0_i32 : i32
    %1 = arith.extui %0 : i1 to i32
    %c0_i32_0 = arith.constant 0 : i32
    %2 = arith.cmpi ne, %1, %c0_i32_0 : i32
    scf.if %2 {
      %cst_41 = arith.constant 0.000000e+00 : f32
      %68 = vector.broadcast %cst_41 : f32 to vector<1x8xf32>
      %c0_42 = arith.constant 0 : index
      %c0_43 = arith.constant 0 : index
      %69 = vector.load %arg12[%c0_42, %c0_43] : memref<1x8xf32, #tpu.memory_space<vmem>>, vector<1x8xf32>
      tpu.vector_store %arg12[%c0_42, %c0_43], %68 {strides = array<i32>} : memref<1x8xf32, #tpu.memory_space<vmem>>, vector<1x8xf32>,
    } else {
    }
    %c128_i32 = arith.constant 128 : i32
    %3 = arith.muli %arg1, %c128_i32 : i32
    %c19_i32 = arith.constant 19 : i32
    %4 = arith.addi %c19_i32, %3 : i32
    %c-19_i32 = arith.constant -19 : i32
    %5 = arith.addi %4, %c-19_i32 : i32
    %c0 = arith.constant 0 : index
    %6 = arith.index_cast %5 : i32 to index
    %c0_1 = arith.constant 0 : index
    %7 = vector.load %arg2[%c0, %6, %c0_1] : memref<1x422x4xf32, #tpu.memory_space<vmem>>, vector<1x128x4xf32>
    %8 = vector.shape_cast %7 : vector<1x128x4xf32> to vector<128x4xf32>
    %c19_i32_2 = arith.constant 19 : i32
    %9 = arith.addi %c19_i32_2, %3 : i32
    %c-18_i32 = arith.constant -18 : i32
    %10 = arith.addi %9, %c-18_i32 : i32
    %c0_3 = arith.constant 0 : index
    %11 = arith.index_cast %10 : i32 to index
    %c0_4 = arith.constant 0 : index
    %12 = vector.load %arg2[%c0_3, %11, %c0_4] : memref<1x422x4xf32, #tpu.memory_space<vmem>>, vector<1x128x4xf32>
    %13 = vector.shape_cast %12 : vector<1x128x4xf32> to vector<128x4xf32>
    %c19_i32_5 = arith.constant 19 : i32
    %14 = arith.addi %c19_i32_5, %3 : i32
    %c-17_i32 = arith.constant -17 : i32
    %15 = arith.addi %14, %c-17_i32 : i32
    %c0_6 = arith.constant 0 : index
    %16 = arith.index_cast %15 : i32 to index
    %c0_7 = arith.constant 0 : index
    %17 = vector.load %arg2[%c0_6, %16, %c0_7] : memref<1x422x4xf32, #tpu.memory_space<vmem>>, vector<1x128x4xf32>
    %18 = vector.shape_cast %17 : vector<1x128x4xf32> to vector<128x4xf32>
    %c19_i32_8 = arith.constant 19 : i32
    %19 = arith.addi %c19_i32_8, %3 : i32
    %c-1_i32 = arith.constant -1 : i32
    %20 = arith.addi %19, %c-1_i32 : i32
    %c0_9 = arith.constant 0 : index
    %21 = arith.index_cast %20 : i32 to index
    %c0_10 = arith.constant 0 : index
    %22 = vector.load %arg2[%c0_9, %21, %c0_10] : memref<1x422x4xf32, #tpu.memory_space<vmem>>, vector<1x128x4xf32>
    %23 = vector.shape_cast %22 : vector<1x128x4xf32> to vector<128x4xf32>
    %c19_i32_11 = arith.constant 19 : i32
    %24 = arith.addi %c19_i32_11, %3 : i32
    %c0_i32_12 = arith.constant 0 : i32
    %25 = arith.addi %24, %c0_i32_12 : i32
    %c0_13 = arith.constant 0 : index
    %26 = arith.index_cast %25 : i32 to index
    %c0_14 = arith.constant 0 : index
    %27 = vector.load %arg2[%c0_13, %26, %c0_14] : memref<1x422x4xf32, #tpu.memory_space<vmem>>, vector<1x128x4xf32>
    %28 = vector.shape_cast %27 : vector<1x128x4xf32> to vector<128x4xf32>
    %c19_i32_15 = arith.constant 19 : i32
    %29 = arith.addi %c19_i32_15, %3 : i32
    %c1_i32 = arith.constant 1 : i32
    %30 = arith.addi %29, %c1_i32 : i32
    %c0_16 = arith.constant 0 : index
    %31 = arith.index_cast %30 : i32 to index
    %c0_17 = arith.constant 0 : index
    %32 = vector.load %arg2[%c0_16, %31, %c0_17] : memref<1x422x4xf32, #tpu.memory_space<vmem>>, vector<1x128x4xf32>
    %33 = vector.shape_cast %32 : vector<1x128x4xf32> to vector<128x4xf32>
    %c19_i32_18 = arith.constant 19 : i32
    %34 = arith.addi %c19_i32_18, %3 : i32
    %c17_i32 = arith.constant 17 : i32
    %35 = arith.addi %34, %c17_i32 : i32
    %c0_19 = arith.constant 0 : index
    %36 = arith.index_cast %35 : i32 to index
    %c0_20 = arith.constant 0 : index
    %37 = vector.load %arg2[%c0_19, %36, %c0_20] : memref<1x422x4xf32, #tpu.memory_space<vmem>>, vector<1x128x4xf32>
    %38 = vector.shape_cast %37 : vector<1x128x4xf32> to vector<128x4xf32>
    %c19_i32_21 = arith.constant 19 : i32
    %39 = arith.addi %c19_i32_21, %3 : i32
    %c18_i32 = arith.constant 18 : i32
    %40 = arith.addi %39, %c18_i32 : i32
    %c0_22 = arith.constant 0 : index
    %41 = arith.index_cast %40 : i32 to index
    %c0_23 = arith.constant 0 : index
    %42 = vector.load %arg2[%c0_22, %41, %c0_23] : memref<1x422x4xf32, #tpu.memory_space<vmem>>, vector<1x128x4xf32>
    %43 = vector.shape_cast %42 : vector<1x128x4xf32> to vector<128x4xf32>
    %c19_i32_24 = arith.constant 19 : i32
    %44 = arith.addi %c19_i32_24, %3 : i32
    %c19_i32_25 = arith.constant 19 : i32
    %45 = arith.addi %44, %c19_i32_25 : i32
    %c0_26 = arith.constant 0 : index
    %46 = arith.index_cast %45 : i32 to index
    %c0_27 = arith.constant 0 : index
    %47 = vector.load %arg2[%c0_26, %46, %c0_27] : memref<1x422x4xf32, #tpu.memory_space<vmem>>, vector<1x128x4xf32>
    %48 = vector.shape_cast %47 : vector<1x128x4xf32> to vector<128x4xf32>
    %49 = tpu.concatenate %8, %13, %18, %23, %28, %33, %38, %43, %48 in 1 : vector<128x4xf32>, vector<128x4xf32>, vector<128x4xf32>, vector<128x4xf32>, vector<128x4xf32>, vector<128x4xf32>, vector<128x4xf32>, vector<128x4xf32>, vector<128x4xf32> -> vector<128x36xf32>
    %c0_28 = arith.constant 0 : index
    %c0_29 = arith.constant 0 : index
    %50 = vector.load %arg4[%c0_28, %c0_29] : memref<36x8xf32, #tpu.memory_space<vmem>>, vector<36x8xf32>
    %cst = arith.constant dense<0.000000e+00> : vector<128x8xf32>
    %51 = tpu.matmul %49, %50, %cst {dimension_numbers = #tpu.dot_dimension_numbers<[1], [0], [0], [1], [0, 0, 1, 1], [], []>} : vector<128x36xf32>, vector<36x8xf32>, vector<128x8xf32> -> vector<128x8xf32>
    %c0_30 = arith.constant 0 : index
    %c0_31 = arith.constant 0 : index
    %52 = vector.load %arg5[%c0_30, %c0_31] : memref<1x8xf32, #tpu.memory_space<vmem>>, vector<1x8xf32>
    %53 = vector.broadcast %52 : vector<1x8xf32> to vector<128x8xf32>
    %54 = arith.addf %51, %53 : vector<128x8xf32>
    %cst_32 = arith.constant 0.000000e+00 : f32
    %55 = vector.broadcast %cst_32 : f32 to vector<128x8xf32>
    %56 = arith.maximumf %54, %55 : vector<128x8xf32>
    %c0_33 = arith.constant 0 : index
    %c0_34 = arith.constant 0 : index
    %57 = vector.load %arg12[%c0_33, %c0_34] : memref<1x8xf32, #tpu.memory_space<vmem>>, vector<1x8xf32>
    %c0_35 = arith.constant 0 : index
    %c0_36 = arith.constant 0 : index
    %58 = vector.load %arg3[%c0_35, %c0_36] : memref<128x1xf32, #tpu.memory_space<vmem>>, vector<128x1xf32>
    %59 = vector.broadcast %58 : vector<128x1xf32> to vector<128x8xf32>
    %60 = arith.mulf %56, %59 : vector<128x8xf32>
    %cst_37 = arith.constant dense<0.000000e+00> : vector<8xf32>
    %61 = vector.multi_reduction <add>, %60, %cst_37 [0] : vector<128x8xf32> to vector<8xf32>
    %62 = vector.shape_cast %61 : vector<8xf32> to vector<1x8xf32>
    %63 = arith.addf %57, %62 : vector<1x8xf32>
    %c0_38 = arith.constant 0 : index
    %c0_39 = arith.constant 0 : index
    %64 = vector.load %arg12[%c0_38, %c0_39] : memref<1x8xf32, #tpu.memory_space<vmem>>, vector<1x8xf32>
    tpu.vector_store %arg12[%c0_38, %c0_39], %63 {strides = array<i32>} : memref<1x8xf32, #tpu.memory_space<vmem>>, vector<1x8xf32>,
    %c2_i32 = arith.constant 2 : i32
    %65 = arith.cmpi eq, %arg1, %c2_i32 : i32
    %66 = arith.extui %65 : i1 to i32
    %c0_i32_40 = arith.constant 0 : i32
    %67 = arith.cmpi ne, %66, %c0_i32_40 : i32
    scf.if %67 {
      %c0_41 = arith.constant 0 : index
      %c0_42 = arith.constant 0 : index
      %68 = vector.load %arg12[%c0_41, %c0_42] : memref<1x8xf32, #tpu.memory_space<vmem>>, vector<1x8xf32>
      %cst_43 = arith.constant 3.906250e-03 : f32
      %69 = vector.broadcast %cst_43 : f32 to vector<1x8xf32>
      %70 = arith.mulf %68, %69 : vector<1x8xf32>
      %c0_44 = arith.constant 0 : index
      %c0_45 = arith.constant 0 : index
      %71 = vector.load %arg6[%c0_44, %c0_45] : memref<8x128xf32, #tpu.memory_space<vmem>>, vector<8x128xf32>
      %cst_46 = arith.constant dense<0.000000e+00> : vector<1x128xf32>
      %72 = tpu.matmul %70, %71, %cst_46 {dimension_numbers = #tpu.dot_dimension_numbers<[1], [0], [0], [1], [0, 0, 1, 1], [], []>} : vector<1x8xf32>, vector<8x128xf32>, vector<1x128xf32> -> vector<1x128xf32>
      %c0_47 = arith.constant 0 : index
      %c0_48 = arith.constant 0 : index
      %73 = vector.load %arg7[%c0_47, %c0_48] : memref<1x128xf32, #tpu.memory_space<vmem>>, vector<1x128xf32>
      %74 = arith.addf %72, %73 : vector<1x128xf32>
      %c0_49 = arith.constant 0 : index
      %c0_50 = arith.constant 0 : index
      %75 = vector.load %arg8[%c0_49, %c0_50] : memref<128x16xf32, #tpu.memory_space<vmem>>, vector<128x16xf32>
      %cst_51 = arith.constant dense<0.000000e+00> : vector<1x16xf32>
      %76 = tpu.matmul %74, %75, %cst_51 {dimension_numbers = #tpu.dot_dimension_numbers<[1], [0], [0], [1], [0, 0, 1, 1], [], []>} : vector<1x128xf32>, vector<128x16xf32>, vector<1x16xf32> -> vector<1x16xf32>
      %c0_52 = arith.constant 0 : index
      %c0_53 = arith.constant 0 : index
      %77 = vector.load %arg9[%c0_52, %c0_53] : memref<1x16xf32, #tpu.memory_space<vmem>>, vector<1x16xf32>
      %78 = arith.addf %76, %77 : vector<1x16xf32>
      %79 = vector.shape_cast %74 : vector<1x128xf32> to vector<1x1x128xf32>
      %c0_54 = arith.constant 0 : index
      %c0_55 = arith.constant 0 : index
      %c0_56 = arith.constant 0 : index
      %80 = vector.load %arg11[%c0_54, %c0_55, %c0_56] : memref<1x1x128xf32, #tpu.memory_space<vmem>>, vector<1x1x128xf32>
      tpu.vector_store %arg11[%c0_54, %c0_55, %c0_56], %79 {strides = array<i32>} : memref<1x1x128xf32, #tpu.memory_space<vmem>>, vector<1x1x128xf32>,
      %81 = vector.shape_cast %78 : vector<1x16xf32> to vector<1x1x16xf32>
      %c0_57 = arith.constant 0 : index
      %c0_58 = arith.constant 0 : index
      %c0_59 = arith.constant 0 : index
      %82 = vector.load %arg10[%c0_57, %c0_58, %c0_59] : memref<1x1x16xf32, #tpu.memory_space<vmem>>, vector<1x1x16xf32>
      tpu.vector_store %arg10[%c0_57, %c0_58, %c0_59], %81 {strides = array<i32>} : memref<1x1x16xf32, #tpu.memory_space<vmem>>, vector<1x1x16xf32>,
    } else {
    }
    return
  }
  func.func @transform_0(%arg0: i32, %arg1: i32) -> (i32, i32, i32) {
    %c0_i32 = arith.constant 0 : i32
    %c0_i32_0 = arith.constant 0 : i32
    %c0_i32_1 = arith.constant 0 : i32
    return %arg0, %c0_i32, %c0_i32_0 : i32, i32, i32
  }
  func.func @transform_1(%arg0: i32, %arg1: i32) -> (i32, i32) {
    %c0_i32 = arith.constant 0 : i32
    %c0_i32_0 = arith.constant 0 : i32
    return %arg1, %c0_i32 : i32, i32
  }
  func.func @transform_2(%arg0: i32, %arg1: i32) -> (i32, i32) {
    %c0_i32 = arith.constant 0 : i32
    %c0_i32_0 = arith.constant 0 : i32
    %c0_i32_1 = arith.constant 0 : i32
    return %c0_i32, %c0_i32_0 : i32, i32
  }
  func.func @transform_3(%arg0: i32, %arg1: i32) -> (i32, i32) {
    %c0_i32 = arith.constant 0 : i32
    %c0_i32_0 = arith.constant 0 : i32
    %c0_i32_1 = arith.constant 0 : i32
    return %c0_i32, %c0_i32_0 : i32, i32
  }
  func.func @transform_4(%arg0: i32, %arg1: i32) -> (i32, i32) {
    %c0_i32 = arith.constant 0 : i32
    %c0_i32_0 = arith.constant 0 : i32
    %c0_i32_1 = arith.constant 0 : i32
    return %c0_i32, %c0_i32_0 : i32, i32
  }
  func.func @transform_5(%arg0: i32, %arg1: i32) -> (i32, i32) {
    %c0_i32 = arith.constant 0 : i32
    %c0_i32_0 = arith.constant 0 : i32
    %c0_i32_1 = arith.constant 0 : i32
    return %c0_i32, %c0_i32_0 : i32, i32
  }
  func.func @transform_6(%arg0: i32, %arg1: i32) -> (i32, i32) {
    %c0_i32 = arith.constant 0 : i32
    %c0_i32_0 = arith.constant 0 : i32
    %c0_i32_1 = arith.constant 0 : i32
    return %c0_i32, %c0_i32_0 : i32, i32
  }
  func.func @transform_7(%arg0: i32, %arg1: i32) -> (i32, i32) {
    %c0_i32 = arith.constant 0 : i32
    %c0_i32_0 = arith.constant 0 : i32
    %c0_i32_1 = arith.constant 0 : i32
    return %c0_i32, %c0_i32_0 : i32, i32
  }
  func.func @transform_8(%arg0: i32, %arg1: i32) -> (i32, i32, i32) {
    %c0_i32 = arith.constant 0 : i32
    %c0_i32_0 = arith.constant 0 : i32
    %c0_i32_1 = arith.constant 0 : i32
    return %arg0, %c0_i32, %c0_i32_0 : i32, i32, i32
  }
  func.func @transform_9(%arg0: i32, %arg1: i32) -> (i32, i32, i32) {
    %c0_i32 = arith.constant 0 : i32
    %c0_i32_0 = arith.constant 0 : i32
    %c0_i32_1 = arith.constant 0 : i32
    return %arg0, %c0_i32, %c0_i32_0 : i32, i32, i32
  }
}

</mosaic_0001>

<llo_original>
// kernel: tpu_custom_call.1
$region0: #{tpu_custom_call.1}
  #allocation0 [shape = 'u32[]', space=smem, size = 0x4, offset = 0x4, fixed_abs, tag = 'smem constant byte address 0x4 - core index']
  #allocation1 [shape = 'u32[144,128]{1,0:T(1,128)}', space=vmem, size = 0x12000, scoped, tag = 'internal scratch']
  #allocation2 [shape = 'f32[1,8]{1,0:T(1,128)}', space=vmem, size = 0x200, scoped, tag = 'scratch operand']
  %s0 = inlined_call_operand.vmem [shape: f32[2,422,4], index: 0, kind: input, shape index: {}]
  %s1 = inlined_call_operand.vmem [shape: f32[384,1], index: 1, kind: input, shape index: {}]
  %s2 = inlined_call_operand.vmem [shape: f32[36,8], index: 2, kind: input, shape index: {}]
  %s3 = inlined_call_operand.vmem [shape: f32[1,8], index: 3, kind: input, shape index: {}]
  %s4 = inlined_call_operand.vmem [shape: f32[8,128], index: 4, kind: input, shape index: {}]
  %s5 = inlined_call_operand.vmem [shape: f32[1,128], index: 5, kind: input, shape index: {}]
  %s6 = inlined_call_operand.vmem [shape: f32[128,16], index: 6, kind: input, shape index: {}]
  %s7 = inlined_call_operand.vmem [shape: f32[1,16], index: 7, kind: input, shape index: {}]
  %s8 = inlined_call_operand.hbm [shape: f32[2,1,16], index: 8, kind: output, shape index: {0}]
  %s9 = inlined_call_operand.hbm [shape: f32[2,1,128], index: 9, kind: output, shape index: {1}]
  %10 = xla_tuple %s8, %s9
  %s11 = sld [smem:[#allocation0]]
  $region81: #{tpu_custom_call.1} parent=0
    _
  %s13 = ssub.s32 1, %s11
  %s14 = scalar_select 0, %s13, %s11
  $region1: #{tpu_custom_call.1} parent=0
    #allocation3 [shape = 'u8[1024]{0}', space=vmem, size = 0x400, scoped, tag = 'output window, operand 0']
    #allocation4 [shape = 's32[2]{0}', space=sflag, size = 0x8, scoped, tag = 'scoped memory for tpu_custom_call.1']
    #allocation5 [shape = 'u8[1024]{0}', space=vmem, size = 0x400, scoped, tag = 'output window, operand 1']
    #allocation6 [shape = 's32[2]{0}', space=sflag, size = 0x8, scoped, tag = 'scoped memory for tpu_custom_call.1']
    %15 = vsyncpa [#allocation4], 0
    %s16 = scalar_lea.sflag [#allocation4], 1
    %17 = vsyncpa %s16, 0
    %18 = vsyncpa [#allocation6], 0
    %s19 = scalar_lea.sflag [#allocation6], 1
    %20 = vsyncpa %s19, 0
    loop: start=0, step=1, limit=8
    $region2: #{tpu_custom_call.1} parent=1 // loop_pre_header
      _
    $region3: #{tpu_custom_call.1} parent=1 // loop_header
      %s22 = sphi 0, %s26
      %p23 = scmp.ge.s32.totalorder %s22, 8
      %s29 = sphi 0, %s41
      %s30 = sphi 0, %s37
      %s31 = sphi 0, %s29
      %s32 = sphi 0, %s30
      %s33 = sphi 0, %s31
      %s34 = sphi 0, %s32
      %s44 = sphi 0, %s46
      %s47 = sphi 0, %s44
      %s48 = sphi 0, %s47
      %s64 = sphi 0, %s48
      %s70 = sphi 0, %s72
      %s73 = sphi 0, %s70
      %s74 = sphi 0, %s73
      %s90 = sphi 0, %s74
      %s94 = sphi 0, %s94
      %s96 = sphi 0, %s94
      %s97 = sphi 0, %s96
      %s111 = sphi 0, %s97
      %s115 = sphi 0, %s115
      %s117 = sphi 0, %s115
      %s118 = sphi 0, %s117
      %s132 = sphi 0, %s118
      %s136 = sphi 0, %s136
      %s138 = sphi 0, %s136
      %s139 = sphi 0, %s138
      %s153 = sphi 0, %s139
      %s157 = sphi 0, %s157
      %s159 = sphi 0, %s157
      %s160 = sphi 0, %s159
      %s174 = sphi 0, %s160
      %s178 = sphi 0, %s178
      %s180 = sphi 0, %s178
      %s181 = sphi 0, %s180
      %s195 = sphi 0, %s181
      %s199 = sphi 0, %s199
      %s201 = sphi 0, %s199
      %s202 = sphi 0, %s201
      %s216 = sphi 0, %s202
      %s222 = sphi 0, %s224
      %s225 = sphi 0, %s222
      %s226 = sphi 0, %s225
      %s242 = sphi 0, %s226
      %s248 = sphi 0, %s250
      %s251 = sphi 0, %s248
      %s252 = sphi 0, %s251
      %s268 = sphi 0, %s252
    $region4: #{tpu_custom_call.1} parent=1 // loop_header_branch
      %25 = sbr.rel (%p23) target = $region8
    $region5: #{tpu_custom_call.1} parent=1 // loop_body
      %s27 = ssub.s32 %s22, 1
      %s28 = ssub.s32 %s22, 2
      %s35 = sadd.s32 1, %s30
      %p36 = scmp.ge.s32.totalorder %s35, 3
      %s37 = scalar_select %p36, 0, %s35
      %s38 = sadd.s32 1, %s29
      %s39 = scalar_select %p36, %s38, %s29
      %p40 = scmp.ge.s32.totalorder %s39, 2
      %s41 = scalar_select %p40, 0, %s39
      %s42 = ssub.s32 %s29, %s41
      %p43 = scmp.eq.s32.totalorder %s42, 0
      %s45 = sadd.s32 %s44, 1
      %s46 = scalar_select %p43, %s44, %s45
      %p49 = pneg %p43
      %p50 = scmp.eq.s32.totalorder %s22, 5
      %p51 = por %p49, %p50
      %p52 = scmp.ne.s32.totalorder %s44, %s47
      %p53 = scmp.eq.s32.totalorder %s22, 0
      %p54 = por %p52, %p53
      %p55 = scmp.ne.s32.totalorder %s44, %s47
      %p56 = scmp.eq.s32.totalorder %s27, 5
      %p57 = por %p55, %p56
      %p58 = scmp.ne.s32.totalorder %s47, %s48
      %p59 = scmp.eq.s32.totalorder %s27, 0
      %p60 = por %p58, %p59
      %p61 = scmp.ne.s32.totalorder %s47, %s48
      %p62 = scmp.eq.s32.totalorder %s28, 5
      %p63 = por %p61, %p62
      %p65 = scmp.ne.s32.totalorder %s48, %s64
      %p66 = scmp.eq.s32.totalorder %s28, 0
      %p67 = por %p65, %p66
      %s68 = ssub.s32 %s30, %s37
      %p69 = scmp.eq.s32.totalorder %s68, 0
      %s71 = sadd.s32 %s70, 1
      %s72 = scalar_select %p69, %s70, %s71
      %p75 = pneg %p69
      %p76 = scmp.eq.s32.totalorder %s22, 5
      %p77 = por %p75, %p76
      %p78 = scmp.ne.s32.totalorder %s70, %s73
      %p79 = scmp.eq.s32.totalorder %s22, 0
      %p80 = por %p78, %p79
      %p81 = scmp.ne.s32.totalorder %s70, %s73
      %p82 = scmp.eq.s32.totalorder %s27, 5
      %p83 = por %p81, %p82
      %p84 = scmp.ne.s32.totalorder %s73, %s74
      %p85 = scmp.eq.s32.totalorder %s27, 0
      %p86 = por %p84, %p85
      %p87 = scmp.ne.s32.totalorder %s73, %s74
      %p88 = scmp.eq.s32.totalorder %s28, 5
      %p89 = por %p87, %p88
      %p91 = scmp.ne.s32.totalorder %s74, %s90
      %p92 = scmp.eq.s32.totalorder %s28, 0
      %p93 = por %p91, %p92
      %s95 = sadd.s32 %s94, 1
      %p98 = scmp.eq.s32.totalorder %s22, 5
      %p99 = scmp.ne.s32.totalorder %s94, %s96
      %p100 = scmp.eq.s32.totalorder %s22, 0
      %p101 = por %p99, %p100
      %p102 = scmp.ne.s32.totalorder %s94, %s96
      %p103 = scmp.eq.s32.totalorder %s27, 5
      %p104 = por %p102, %p103
      %p105 = scmp.ne.s32.totalorder %s96, %s97
      %p106 = scmp.eq.s32.totalorder %s27, 0
      %p107 = por %p105, %p106
      %p108 = scmp.ne.s32.totalorder %s96, %s97
      %p109 = scmp.eq.s32.totalorder %s28, 5
      %p110 = por %p108, %p109
      %p112 = scmp.ne.s32.totalorder %s97, %s111
      %p113 = scmp.eq.s32.totalorder %s28, 0
      %p114 = por %p112, %p113
      %s116 = sadd.s32 %s115, 1
      %p119 = scmp.eq.s32.totalorder %s22, 5
      %p120 = scmp.ne.s32.totalorder %s115, %s117
      %p121 = scmp.eq.s32.totalorder %s22, 0
      %p122 = por %p120, %p121
      %p123 = scmp.ne.s32.totalorder %s115, %s117
      %p124 = scmp.eq.s32.totalorder %s27, 5
      %p125 = por %p123, %p124
      %p126 = scmp.ne.s32.totalorder %s117, %s118
      %p127 = scmp.eq.s32.totalorder %s27, 0
      %p128 = por %p126, %p127
      %p129 = scmp.ne.s32.totalorder %s117, %s118
      %p130 = scmp.eq.s32.totalorder %s28, 5
      %p131 = por %p129, %p130
      %p133 = scmp.ne.s32.totalorder %s118, %s132
      %p134 = scmp.eq.s32.totalorder %s28, 0
      %p135 = por %p133, %p134
      %s137 = sadd.s32 %s136, 1
      %p140 = scmp.eq.s32.totalorder %s22, 5
      %p141 = scmp.ne.s32.totalorder %s136, %s138
      %p142 = scmp.eq.s32.totalorder %s22, 0
      %p143 = por %p141, %p142
      %p144 = scmp.ne.s32.totalorder %s136, %s138
      %p145 = scmp.eq.s32.totalorder %s27, 5
      %p146 = por %p144, %p145
      %p147 = scmp.ne.s32.totalorder %s138, %s139
      %p148 = scmp.eq.s32.totalorder %s27, 0
      %p149 = por %p147, %p148
      %p150 = scmp.ne.s32.totalorder %s138, %s139
      %p151 = scmp.eq.s32.totalorder %s28, 5
      %p152 = por %p150, %p151
      %p154 = scmp.ne.s32.totalorder %s139, %s153
      %p155 = scmp.eq.s32.totalorder %s28, 0
      %p156 = por %p154, %p155
      %s158 = sadd.s32 %s157, 1
      %p161 = scmp.eq.s32.totalorder %s22, 5
      %p162 = scmp.ne.s32.totalorder %s157, %s159
      %p163 = scmp.eq.s32.totalorder %s22, 0
      %p164 = por %p162, %p163
      %p165 = scmp.ne.s32.totalorder %s157, %s159
      %p166 = scmp.eq.s32.totalorder %s27, 5
      %p167 = por %p165, %p166
      %p168 = scmp.ne.s32.totalorder %s159, %s160
      %p169 = scmp.eq.s32.totalorder %s27, 0
      %p170 = por %p168, %p169
      %p171 = scmp.ne.s32.totalorder %s159, %s160
      %p172 = scmp.eq.s32.totalorder %s28, 5
      %p173 = por %p171, %p172
      %p175 = scmp.ne.s32.totalorder %s160, %s174
      %p176 = scmp.eq.s32.totalorder %s28, 0
      %p177 = por %p175, %p176
      %s179 = sadd.s32 %s178, 1
      %p182 = scmp.eq.s32.totalorder %s22, 5
      %p183 = scmp.ne.s32.totalorder %s178, %s180
      %p184 = scmp.eq.s32.totalorder %s22, 0
      %p185 = por %p183, %p184
      %p186 = scmp.ne.s32.totalorder %s178, %s180
      %p187 = scmp.eq.s32.totalorder %s27, 5
      %p188 = por %p186, %p187
      %p189 = scmp.ne.s32.totalorder %s180, %s181
      %p190 = scmp.eq.s32.totalorder %s27, 0
      %p191 = por %p189, %p190
      %p192 = scmp.ne.s32.totalorder %s180, %s181
      %p193 = scmp.eq.s32.totalorder %s28, 5
      %p194 = por %p192, %p193
      %p196 = scmp.ne.s32.totalorder %s181, %s195
      %p197 = scmp.eq.s32.totalorder %s28, 0
      %p198 = por %p196, %p197
      %s200 = sadd.s32 %s199, 1
      %p203 = scmp.eq.s32.totalorder %s22, 5
      %p204 = scmp.ne.s32.totalorder %s199, %s201
      %p205 = scmp.eq.s32.totalorder %s22, 0
      %p206 = por %p204, %p205
      %p207 = scmp.ne.s32.totalorder %s199, %s201
      %p208 = scmp.eq.s32.totalorder %s27, 5
      %p209 = por %p207, %p208
      %p210 = scmp.ne.s32.totalorder %s201, %s202
      %p211 = scmp.eq.s32.totalorder %s27, 0
      %p212 = por %p210, %p211
      %p213 = scmp.ne.s32.totalorder %s201, %s202
      %p214 = scmp.eq.s32.totalorder %s28, 5
      %p215 = por %p213, %p214
      %p217 = scmp.ne.s32.totalorder %s202, %s216
      %p218 = scmp.eq.s32.totalorder %s28, 0
      %p219 = por %p217, %p218
      %s220 = ssub.s32 %s29, %s41
      %p221 = scmp.eq.s32.totalorder %s220, 0
      %s223 = sadd.s32 %s222, 1
      %s224 = scalar_select %p221, %s222, %s223
      %p227 = pneg %p221
      %p228 = scmp.eq.s32.totalorder %s22, 5
      %p229 = por %p227, %p228
      %p230 = scmp.ne.s32.totalorder %s222, %s225
      %p231 = scmp.eq.s32.totalorder %s22, 0
      %p232 = por %p230, %p231
      %p233 = scmp.ne.s32.totalorder %s222, %s225
      %p234 = scmp.eq.s32.totalorder %s27, 5
      %p235 = por %p233, %p234
      %p236 = scmp.ne.s32.totalorder %s225, %s226
      %p237 = scmp.eq.s32.totalorder %s27, 0
      %p238 = por %p236, %p237
      %p239 = scmp.ne.s32.totalorder %s225, %s226
      %p240 = scmp.eq.s32.totalorder %s28, 5
      %p241 = por %p239, %p240
      %p243 = scmp.ne.s32.totalorder %s226, %s242
      %p244 = scmp.eq.s32.totalorder %s28, 0
      %p245 = por %p243, %p244
      %s246 = ssub.s32 %s29, %s41
      %p247 = scmp.eq.s32.totalorder %s246, 0
      %s249 = sadd.s32 %s248, 1
      %s250 = scalar_select %p247, %s248, %s249
      %p253 = pneg %p247
      %p254 = scmp.eq.s32.totalorder %s22, 5
      %p255 = por %p253, %p254
      %p256 = scmp.ne.s32.totalorder %s248, %s251
      %p257 = scmp.eq.s32.totalorder %s22, 0
      %p258 = por %p256, %p257
      %p259 = scmp.ne.s32.totalorder %s248, %s251
      %p260 = scmp.eq.s32.totalorder %s27, 5
      %p261 = por %p259, %p260
      %p262 = scmp.ne.s32.totalorder %s251, %s252
      %p263 = scmp.eq.s32.totalorder %s27, 0
      %p264 = por %p262, %p263
      %p265 = scmp.ne.s32.totalorder %s251, %s252
      %p266 = scmp.eq.s32.totalorder %s28, 5
      %p267 = por %p265, %p266
      %p269 = scmp.ne.s32.totalorder %s252, %s268
      %p270 = scmp.eq.s32.totalorder %s28, 0
      %p271 = por %p269, %p270
      %p272 = scmp.le.s32.totalorder 1, %s22
      %p273 = scmp.lt.s32.totalorder %s22, 7
      %p274 = pnand %p272, %p273
      %p275 = pneg %p274
      // Predicated region
      $region9: #{tpu_custom_call.1} parent=5 // pred_check
        _
      $region10: #{tpu_custom_call.1} parent=5 // pred_check_branch
        %277 = sbr.rel (%p274) target = $region12
      $region11: #{tpu_custom_call.1} parent=5 // pred_region
        %s278 = ssub.s32 %s22, 1
        // Predicated region
        $region13: #{tpu_custom_call.1} parent=11 // pred_check
          %p279 = pneg %p107
        $region14: #{tpu_custom_call.1} parent=11 // pred_check_branch
          %281 = sbr.rel (%p279) target = $region16
        $region15: #{tpu_custom_call.1} parent=11 // pred_region
          _
        $region16: #{tpu_custom_call.1} parent=11 // pred_fallthru
          _
        // Predicated region
        $region17: #{tpu_custom_call.1} parent=11 // pred_check
          %p282 = pneg %p128
        $region18: #{tpu_custom_call.1} parent=11 // pred_check_branch
          %284 = sbr.rel (%p282) target = $region20
        $region19: #{tpu_custom_call.1} parent=11 // pred_region
          _
        $region20: #{tpu_custom_call.1} parent=11 // pred_fallthru
          _
        // Predicated region
        $region21: #{tpu_custom_call.1} parent=11 // pred_check
          %p285 = pneg %p149
        $region22: #{tpu_custom_call.1} parent=11 // pred_check_branch
          %287 = sbr.rel (%p285) target = $region24
        $region23: #{tpu_custom_call.1} parent=11 // pred_region
          _
        $region24: #{tpu_custom_call.1} parent=11 // pred_fallthru
          _
        // Predicated region
        $region25: #{tpu_custom_call.1} parent=11 // pred_check
          %p288 = pneg %p170
        $region26: #{tpu_custom_call.1} parent=11 // pred_check_branch
          %290 = sbr.rel (%p288) target = $region28
        $region27: #{tpu_custom_call.1} parent=11 // pred_region
          _
        $region28: #{tpu_custom_call.1} parent=11 // pred_fallthru
          _
        // Predicated region
        $region29: #{tpu_custom_call.1} parent=11 // pred_check
          %p291 = pneg %p191
        $region30: #{tpu_custom_call.1} parent=11 // pred_check_branch
          %293 = sbr.rel (%p291) target = $region32
        $region31: #{tpu_custom_call.1} parent=11 // pred_region
          _
        $region32: #{tpu_custom_call.1} parent=11 // pred_fallthru
          _
        // Predicated region
        $region33: #{tpu_custom_call.1} parent=11 // pred_check
          %p294 = pneg %p212
        $region34: #{tpu_custom_call.1} parent=11 // pred_check_branch
          %296 = sbr.rel (%p294) target = $region36
        $region35: #{tpu_custom_call.1} parent=11 // pred_region
          _
        $region36: #{tpu_custom_call.1} parent=11 // pred_fallthru
          _
      $region12: #{tpu_custom_call.1} parent=5 // pred_fallthru
        _
      %p297 = scmp.lt.s32.totalorder %s22, 6
      // Predicated region
      $region37: #{tpu_custom_call.1} parent=5 // pred_check
        %p298 = pneg %p297
      $region38: #{tpu_custom_call.1} parent=5 // pred_check_branch
        %300 = sbr.rel (%p298) target = $region40
      $region39: #{tpu_custom_call.1} parent=5 // pred_region
        // Predicated region
        $region41: #{tpu_custom_call.1} parent=39 // pred_check
          %p301 = pneg %p54
        $region42: #{tpu_custom_call.1} parent=39 // pred_check_branch
          %303 = sbr.rel (%p301) target = $region44
        $region43: #{tpu_custom_call.1} parent=39 // pred_region
          %p304 = scmp.lt.s32.totalorder %s29, 1
          %s305 = scalar_select %p304, %s29, 1
          %s306 = smul.addr %s305, 53
          %s307 = smul.addr %s306, 8
          %s308 = scalar_lea.vmem %s0, %s307
        $region44: #{tpu_custom_call.1} parent=39 // pred_fallthru
          _
        // Predicated region
        $region45: #{tpu_custom_call.1} parent=39 // pred_check
          %p309 = pneg %p80
        $region46: #{tpu_custom_call.1} parent=39 // pred_check_branch
          %311 = sbr.rel (%p309) target = $region48
        $region47: #{tpu_custom_call.1} parent=39 // pred_region
          %s312 = smul.u32 16, %s30
          %p313 = scmp.lt.s32.totalorder %s312, 47
          %s314 = scalar_select %p313, %s312, 47
          %s315 = smul.addr %s314, 8
          %s316 = scalar_lea.vmem %s1, %s315
          %s317 = smul.u32 16, %s30
        $region48: #{tpu_custom_call.1} parent=39 // pred_fallthru
          _
      $region40: #{tpu_custom_call.1} parent=5 // pred_fallthru
        _
      %p318 = scmp.le.s32.totalorder 1, %s22
      %p319 = scmp.lt.s32.totalorder %s22, 7
      %p320 = pnand %p318, %p319
      %p321 = pneg %p320
      // Predicated region
      $region49: #{tpu_custom_call.1} parent=5 // pred_check
        _
      $region50: #{tpu_custom_call.1} parent=5 // pred_check_branch
        %323 = sbr.rel (%p320) target = $region52
      $region51: #{tpu_custom_call.1} parent=5 // pred_region
        %s324 = ssub.s32 %s22, 1
        %p325 = scmp.lt.s32.totalorder %s31, 1
        %s326 = scalar_select %p325, %s31, 1
        %s327 = smul.addr %s326, 53
        %s328 = smul.addr %s327, 8
        %s329 = scalar_lea.vmem %s0, %s328
        %p330 = pneg %p60
        %p331 = pneg %p57
        %s332 = smul.u32 16, %s32
        %p333 = scmp.lt.s32.totalorder %s332, 47
        %s334 = scalar_select %p333, %s332, 47
        %s335 = smul.addr %s334, 8
        %s336 = scalar_lea.vmem %s1, %s335
        %p337 = pneg %p86
        %p338 = pneg %p83
        %p339 = pneg %p107
        %p340 = pneg %p104
        %p341 = pneg %p128
        %p342 = pneg %p125
        %p343 = pneg %p149
        %p344 = pneg %p146
        %p345 = pneg %p170
        %p346 = pneg %p167
        %p347 = pneg %p191
        %p348 = pneg %p188
        %p349 = pneg %p212
        %p350 = pneg %p209
        %p351 = pneg %p238
        %p352 = pneg %p235
        %s353 = sand.u32 %s225, 1
        %s354 = scalar_lea.sflag [#allocation4], %s353
        %s355 = sand.u32 %s225, 1
        %s356 = scalar_lea.vmem [#allocation3], %s355
        %p357 = pneg %p264
        %p358 = pneg %p261
        %s359 = sand.u32 %s251, 1
        %s360 = scalar_lea.sflag [#allocation6], %s359
        %s361 = sand.u32 %s251, 1
        %s362 = scalar_lea.vmem [#allocation5], %s361
        %p363 = scmp.lt.s32.totalorder %s31, 1
        %s364 = scalar_select %p363, %s31, 1
        %s365 = smul.addr %s364, 53
        %s366 = smul.addr %s365, 8
        %s367 = scalar_lea.vmem %s0, %s366
        %s368 = smul.u32 16, %s32
        %p369 = scmp.lt.s32.totalorder %s368, 47
        %s370 = scalar_select %p369, %s368, 47
        %s371 = smul.addr %s370, 8
        %s372 = scalar_lea.vmem %s1, %s371
        %s373 = smul.u32 16, %s32
        %p374 = scmp.eq.s32.totalorder %s32, 0
        // Predicated region
        $region53: #{tpu_custom_call.1} parent=51 // pred_check
          %p375 = pneg %p374
        $region54: #{tpu_custom_call.1} parent=51 // pred_check_branch
          %377 = sbr.rel (%p375) target = $region56
        $region55: #{tpu_custom_call.1} parent=51 // pred_region
          %vm378 = vcmask 57344
          %379 = vst.msk [vmem:[#allocation2] sm:$0x1] %vm378, 0.0
        $region56: #{tpu_custom_call.1} parent=51 // pred_fallthru
          _
        %s380 = smul.u32 %s32, 128
        %s381 = scalar_lea.vmem %s367, %s380
        %v382 = vld [vmem:[%s381] sm:$0xff]
        %v383 = vld [vmem:[%s381 + $0x8] sm:$0xff]
        %v384 = vld [vmem:[%s381 + $0x10] sm:$0xff]
        %v385 = vld [vmem:[%s381 + $0x18] sm:$0xff]
        %v386 = vld [vmem:[%s381 + $0x20] sm:$0xff]
        %v387 = vld [vmem:[%s381 + $0x28] sm:$0xff]
        %v388 = vld [vmem:[%s381 + $0x30] sm:$0xff]
        %v389 = vld [vmem:[%s381 + $0x38] sm:$0xff]
        %v390 = vld [vmem:[%s381 + $0x40] sm:$0xff]
        %v391 = vld [vmem:[%s381 + $0x48] sm:$0xff]
        %v392 = vld [vmem:[%s381 + $0x50] sm:$0xff]
        %v393 = vld [vmem:[%s381 + $0x58] sm:$0xff]
        %v394 = vld [vmem:[%s381 + $0x60] sm:$0xff]
        %v395 = vld [vmem:[%s381 + $0x68] sm:$0xff]
        %v396 = vld [vmem:[%s381 + $0x70] sm:$0xff]
        %v397 = vld [vmem:[%s381 + $0x78] sm:$0xff]
        %s398 = sadd.s32 %s380, 1
        %s399 = scalar_lea.vmem %s367, %s398
        %v400 = vld [vmem:[%s399] sm:$0xff]
        %v401 = vld [vmem:[%s399 + $0x8] sm:$0xff]
        %v402 = vld [vmem:[%s399 + $0x10] sm:$0xff]
        %v403 = vld [vmem:[%s399 + $0x18] sm:$0xff]
        %v404 = vld [vmem:[%s399 + $0x20] sm:$0xff]
        %v405 = vld [vmem:[%s399 + $0x28] sm:$0xff]
        %v406 = vld [vmem:[%s399 + $0x30] sm:$0xff]
        %v407 = vld [vmem:[%s399 + $0x38] sm:$0xff]
        %v408 = vld [vmem:[%s399 + $0x40] sm:$0xff]
        %v409 = vld [vmem:[%s399 + $0x48] sm:$0xff]
        %v410 = vld [vmem:[%s399 + $0x50] sm:$0xff]
        %v411 = vld [vmem:[%s399 + $0x58] sm:$0xff]
        %v412 = vld [vmem:[%s399 + $0x60] sm:$0xff]
        %v413 = vld [vmem:[%s399 + $0x68] sm:$0xff]
        %v414 = vld [vmem:[%s399 + $0x70] sm:$0xff]
        %v415 = vld [vmem:[%s399 + $0x78] sm:$0xff]
        %s416 = sadd.s32 %s380, 2
        %s417 = scalar_lea.vmem %s367, %s416
        %v418 = vld [vmem:[%s417] sm:$0xff]
        %v419 = vld [vmem:[%s417 + $0x8] sm:$0xff]
        %v420 = vld [vmem:[%s417 + $0x10] sm:$0xff]
        %v421 = vld [vmem:[%s417 + $0x18] sm:$0xff]
        %v422 = vld [vmem:[%s417 + $0x20] sm:$0xff]
        %v423 = vld [vmem:[%s417 + $0x28] sm:$0xff]
        %v424 = vld [vmem:[%s417 + $0x30] sm:$0xff]
        %v425 = vld [vmem:[%s417 + $0x38] sm:$0xff]
        %v426 = vld [vmem:[%s417 + $0x40] sm:$0xff]
        %v427 = vld [vmem:[%s417 + $0x48] sm:$0xff]
        %v428 = vld [vmem:[%s417 + $0x50] sm:$0xff]
        %v429 = vld [vmem:[%s417 + $0x58] sm:$0xff]
        %v430 = vld [vmem:[%s417 + $0x60] sm:$0xff]
        %v431 = vld [vmem:[%s417 + $0x68] sm:$0xff]
        %v432 = vld [vmem:[%s417 + $0x70] sm:$0xff]
        %v433 = vld [vmem:[%s417 + $0x78] sm:$0xff]
        %s434 = sadd.s32 %s380, 18
        %s435 = scalar_lea.vmem %s367, %s434
        %v436 = vld [vmem:[%s435] sm:$0xff]
        %v437 = vld [vmem:[%s435 + $0x8] sm:$0xff]
        %v438 = vld [vmem:[%s435 + $0x10] sm:$0xff]
        %v439 = vld [vmem:[%s435 + $0x18] sm:$0xff]
        %v440 = vld [vmem:[%s435 + $0x20] sm:$0xff]
        %v441 = vld [vmem:[%s435 + $0x28] sm:$0xff]
        %v442 = vld [vmem:[%s435 + $0x30] sm:$0xff]
        %v443 = vld [vmem:[%s435 + $0x38] sm:$0xff]
        %v444 = vld [vmem:[%s435 + $0x40] sm:$0xff]
        %v445 = vld [vmem:[%s435 + $0x48] sm:$0xff]
        %v446 = vld [vmem:[%s435 + $0x50] sm:$0xff]
        %v447 = vld [vmem:[%s435 + $0x58] sm:$0xff]
        %v448 = vld [vmem:[%s435 + $0x60] sm:$0xff]
        %v449 = vld [vmem:[%s435 + $0x68] sm:$0xff]
        %v450 = vld [vmem:[%s435 + $0x70] sm:$0xff]
        %v451 = vld [vmem:[%s435 + $0x78] sm:$0xff]
        %s452 = sadd.s32 %s380, 19
        %s453 = scalar_lea.vmem %s367, %s452
        %v454 = vld [vmem:[%s453] sm:$0xff]
        %v455 = vld [vmem:[%s453 + $0x8] sm:$0xff]
        %v456 = vld [vmem:[%s453 + $0x10] sm:$0xff]
        %v457 = vld [vmem:[%s453 + $0x18] sm:$0xff]
        %v458 = vld [vmem:[%s453 + $0x20] sm:$0xff]
        %v459 = vld [vmem:[%s453 + $0x28] sm:$0xff]
        %v460 = vld [vmem:[%s453 + $0x30] sm:$0xff]
        %v461 = vld [vmem:[%s453 + $0x38] sm:$0xff]
        %v462 = vld [vmem:[%s453 + $0x40] sm:$0xff]
        %v463 = vld [vmem:[%s453 + $0x48] sm:$0xff]
        %v464 = vld [vmem:[%s453 + $0x50] sm:$0xff]
        %v465 = vld [vmem:[%s453 + $0x58] sm:$0xff]
        %v466 = vld [vmem:[%s453 + $0x60] sm:$0xff]
        %v467 = vld [vmem:[%s453 + $0x68] sm:$0xff]
        %v468 = vld [vmem:[%s453 + $0x70] sm:$0xff]
        %v469 = vld [vmem:[%s453 + $0x78] sm:$0xff]
        %s470 = sadd.s32 %s380, 20
        %s471 = scalar_lea.vmem %s367, %s470
        %v472 = vld [vmem:[%s471] sm:$0xff]
        %v473 = vld [vmem:[%s471 + $0x8] sm:$0xff]
        %v474 = vld [vmem:[%s471 + $0x10] sm:$0xff]
        %v475 = vld [vmem:[%s471 + $0x18] sm:$0xff]
        %v476 = vld [vmem:[%s471 + $0x20] sm:$0xff]
        %v477 = vld [vmem:[%s471 + $0x28] sm:$0xff]
        %v478 = vld [vmem:[%s471 + $0x30] sm:$0xff]
        %v479 = vld [vmem:[%s471 + $0x38] sm:$0xff]
        %v480 = vld [vmem:[%s471 + $0x40] sm:$0xff]
        %v481 = vld [vmem:[%s471 + $0x48] sm:$0xff]
        %v482 = vld [vmem:[%s471 + $0x50] sm:$0xff]
        %v483 = vld [vmem:[%s471 + $0x58] sm:$0xff]
        %v484 = vld [vmem:[%s471 + $0x60] sm:$0xff]
        %v485 = vld [vmem:[%s471 + $0x68] sm:$0xff]
        %v486 = vld [vmem:[%s471 + $0x70] sm:$0xff]
        %v487 = vld [vmem:[%s471 + $0x78] sm:$0xff]
        %s488 = sadd.s32 %s380, 36
        %s489 = scalar_lea.vmem %s367, %s488
        %v490 = vld [vmem:[%s489] sm:$0xff]
        %v491 = vld [vmem:[%s489 + $0x8] sm:$0xff]
        %v492 = vld [vmem:[%s489 + $0x10] sm:$0xff]
        %v493 = vld [vmem:[%s489 + $0x18] sm:$0xff]
        %v494 = vld [vmem:[%s489 + $0x20] sm:$0xff]
        %v495 = vld [vmem:[%s489 + $0x28] sm:$0xff]
        %v496 = vld [vmem:[%s489 + $0x30] sm:$0xff]
        %v497 = vld [vmem:[%s489 + $0x38] sm:$0xff]
        %v498 = vld [vmem:[%s489 + $0x40] sm:$0xff]
        %v499 = vld [vmem:[%s489 + $0x48] sm:$0xff]
        %v500 = vld [vmem:[%s489 + $0x50] sm:$0xff]
        %v501 = vld [vmem:[%s489 + $0x58] sm:$0xff]
        %v502 = vld [vmem:[%s489 + $0x60] sm:$0xff]
        %v503 = vld [vmem:[%s489 + $0x68] sm:$0xff]
        %v504 = vld [vmem:[%s489 + $0x70] sm:$0xff]
        %v505 = vld [vmem:[%s489 + $0x78] sm:$0xff]
        %s506 = sadd.s32 %s380, 37
        %s507 = scalar_lea.vmem %s367, %s506
        %v508 = vld [vmem:[%s507] sm:$0xff]
        %v509 = vld [vmem:[%s507 + $0x8] sm:$0xff]
        %v510 = vld [vmem:[%s507 + $0x10] sm:$0xff]
        %v511 = vld [vmem:[%s507 + $0x18] sm:$0xff]
        %v512 = vld [vmem:[%s507 + $0x20] sm:$0xff]
        %v513 = vld [vmem:[%s507 + $0x28] sm:$0xff]
        %v514 = vld [vmem:[%s507 + $0x30] sm:$0xff]
        %v515 = vld [vmem:[%s507 + $0x38] sm:$0xff]
        %v516 = vld [vmem:[%s507 + $0x40] sm:$0xff]
        %v517 = vld [vmem:[%s507 + $0x48] sm:$0xff]
        %v518 = vld [vmem:[%s507 + $0x50] sm:$0xff]
        %v519 = vld [vmem:[%s507 + $0x58] sm:$0xff]
        %v520 = vld [vmem:[%s507 + $0x60] sm:$0xff]
        %v521 = vld [vmem:[%s507 + $0x68] sm:$0xff]
        %v522 = vld [vmem:[%s507 + $0x70] sm:$0xff]
        %v523 = vld [vmem:[%s507 + $0x78] sm:$0xff]
        %s524 = sadd.s32 %s380, 38
        %s525 = scalar_lea.vmem %s367, %s524
        %v526 = vld [vmem:[%s525] sm:$0xff]
        %v527 = vld [vmem:[%s525 + $0x8] sm:$0xff]
        %v528 = vld [vmem:[%s525 + $0x10] sm:$0xff]
        %v529 = vld [vmem:[%s525 + $0x18] sm:$0xff]
        %v530 = vld [vmem:[%s525 + $0x20] sm:$0xff]
        %v531 = vld [vmem:[%s525 + $0x28] sm:$0xff]
        %v532 = vld [vmem:[%s525 + $0x30] sm:$0xff]
        %v533 = vld [vmem:[%s525 + $0x38] sm:$0xff]
        %v534 = vld [vmem:[%s525 + $0x40] sm:$0xff]
        %v535 = vld [vmem:[%s525 + $0x48] sm:$0xff]
        %v536 = vld [vmem:[%s525 + $0x50] sm:$0xff]
        %v537 = vld [vmem:[%s525 + $0x58] sm:$0xff]
        %v538 = vld [vmem:[%s525 + $0x60] sm:$0xff]
        %v539 = vld [vmem:[%s525 + $0x68] sm:$0xff]
        %v540 = vld [vmem:[%s525 + $0x70] sm:$0xff]
        %v541 = vld [vmem:[%s525 + $0x78] sm:$0xff]
        %558 = vrot.lane.b32.xlu0 %v400, 4
        %v559 = vpop.permute.xlu0 %558
        %560 = vrot.lane.b32.xlu0 %v401, 4
        %v561 = vpop.permute.xlu0 %560
        %562 = vrot.lane.b32.xlu0 %v402, 4
        %v563 = vpop.permute.xlu0 %562
        %564 = vrot.lane.b32.xlu0 %v403, 4
        %v565 = vpop.permute.xlu0 %564
        %566 = vrot.lane.b32.xlu0 %v404, 4
        %v567 = vpop.permute.xlu0 %566
        %568 = vrot.lane.b32.xlu0 %v405, 4
        %v569 = vpop.permute.xlu0 %568
        %570 = vrot.lane.b32.xlu0 %v406, 4
        %v571 = vpop.permute.xlu0 %570
        %572 = vrot.lane.b32.xlu0 %v407, 4
        %v573 = vpop.permute.xlu0 %572
        %574 = vrot.lane.b32.xlu0 %v408, 4
        %v575 = vpop.permute.xlu0 %574
        %576 = vrot.lane.b32.xlu0 %v409, 4
        %v577 = vpop.permute.xlu0 %576
        %578 = vrot.lane.b32.xlu0 %v410, 4
        %v579 = vpop.permute.xlu0 %578
        %580 = vrot.lane.b32.xlu0 %v411, 4
        %v581 = vpop.permute.xlu0 %580
        %582 = vrot.lane.b32.xlu0 %v412, 4
        %v583 = vpop.permute.xlu0 %582
        %584 = vrot.lane.b32.xlu0 %v413, 4
        %v585 = vpop.permute.xlu0 %584
        %586 = vrot.lane.b32.xlu0 %v414, 4
        %v587 = vpop.permute.xlu0 %586
        %588 = vrot.lane.b32.xlu0 %v415, 4
        %v589 = vpop.permute.xlu0 %588
        %622 = vrot.lane.b32.xlu0 %v418, 8
        %v623 = vpop.permute.xlu0 %622
        %624 = vrot.lane.b32.xlu0 %v419, 8
        %v625 = vpop.permute.xlu0 %624
        %626 = vrot.lane.b32.xlu0 %v420, 8
        %v627 = vpop.permute.xlu0 %626
        %628 = vrot.lane.b32.xlu0 %v421, 8
        %v629 = vpop.permute.xlu0 %628
        %630 = vrot.lane.b32.xlu0 %v422, 8
        %v631 = vpop.permute.xlu0 %630
        %632 = vrot.lane.b32.xlu0 %v423, 8
        %v633 = vpop.permute.xlu0 %632
        %634 = vrot.lane.b32.xlu0 %v424, 8
        %v635 = vpop.permute.xlu0 %634
        %636 = vrot.lane.b32.xlu0 %v425, 8
        %v637 = vpop.permute.xlu0 %636
        %638 = vrot.lane.b32.xlu0 %v426, 8
        %v639 = vpop.permute.xlu0 %638
        %640 = vrot.lane.b32.xlu0 %v427, 8
        %v641 = vpop.permute.xlu0 %640
        %642 = vrot.lane.b32.xlu0 %v428, 8
        %v643 = vpop.permute.xlu0 %642
        %644 = vrot.lane.b32.xlu0 %v429, 8
        %v645 = vpop.permute.xlu0 %644
        %646 = vrot.lane.b32.xlu0 %v430, 8
        %v647 = vpop.permute.xlu0 %646
        %648 = vrot.lane.b32.xlu0 %v431, 8
        %v649 = vpop.permute.xlu0 %648
        %650 = vrot.lane.b32.xlu0 %v432, 8
        %v651 = vpop.permute.xlu0 %650
        %652 = vrot.lane.b32.xlu0 %v433, 8
        %v653 = vpop.permute.xlu0 %652
        %686 = vrot.lane.b32.xlu0 %v436, 12
        %v687 = vpop.permute.xlu0 %686
        %688 = vrot.lane.b32.xlu0 %v437, 12
        %v689 = vpop.permute.xlu0 %688
        %690 = vrot.lane.b32.xlu0 %v438, 12
        %v691 = vpop.permute.xlu0 %690
        %692 = vrot.lane.b32.xlu0 %v439, 12
        %v693 = vpop.permute.xlu0 %692
        %694 = vrot.lane.b32.xlu0 %v440, 12
        %v695 = vpop.permute.xlu0 %694
        %696 = vrot.lane.b32.xlu0 %v441, 12
        %v697 = vpop.permute.xlu0 %696
        %698 = vrot.lane.b32.xlu0 %v442, 12
        %v699 = vpop.permute.xlu0 %698
        %700 = vrot.lane.b32.xlu0 %v443, 12
        %v701 = vpop.permute.xlu0 %700
        %702 = vrot.lane.b32.xlu0 %v444, 12
        %v703 = vpop.permute.xlu0 %702
        %704 = vrot.lane.b32.xlu0 %v445, 12
        %v705 = vpop.permute.xlu0 %704
        %706 = vrot.lane.b32.xlu0 %v446, 12
        %v707 = vpop.permute.xlu0 %706
        %708 = vrot.lane.b32.xlu0 %v447, 12
        %v709 = vpop.permute.xlu0 %708
        %710 = vrot.lane.b32.xlu0 %v448, 12
        %v711 = vpop.permute.xlu0 %710
        %712 = vrot.lane.b32.xlu0 %v449, 12
        %v713 = vpop.permute.xlu0 %712
        %714 = vrot.lane.b32.xlu0 %v450, 12
        %v715 = vpop.permute.xlu0 %714
        %716 = vrot.lane.b32.xlu0 %v451, 12
        %v717 = vpop.permute.xlu0 %716
        %750 = vrot.lane.b32.xlu0 %v454, 16
        %v751 = vpop.permute.xlu0 %750
        %752 = vrot.lane.b32.xlu0 %v455, 16
        %v753 = vpop.permute.xlu0 %752
        %754 = vrot.lane.b32.xlu0 %v456, 16
        %v755 = vpop.permute.xlu0 %754
        %756 = vrot.lane.b32.xlu0 %v457, 16
        %v757 = vpop.permute.xlu0 %756
        %758 = vrot.lane.b32.xlu0 %v458, 16
        %v759 = vpop.permute.xlu0 %758
        %760 = vrot.lane.b32.xlu0 %v459, 16
        %v761 = vpop.permute.xlu0 %760
        %762 = vrot.lane.b32.xlu0 %v460, 16
        %v763 = vpop.permute.xlu0 %762
        %764 = vrot.lane.b32.xlu0 %v461, 16
        %v765 = vpop.permute.xlu0 %764
        %766 = vrot.lane.b32.xlu0 %v462, 16
        %v767 = vpop.permute.xlu0 %766
        %768 = vrot.lane.b32.xlu0 %v463, 16
        %v769 = vpop.permute.xlu0 %768
        %770 = vrot.lane.b32.xlu0 %v464, 16
        %v771 = vpop.permute.xlu0 %770
        %772 = vrot.lane.b32.xlu0 %v465, 16
        %v773 = vpop.permute.xlu0 %772
        %774 = vrot.lane.b32.xlu0 %v466, 16
        %v775 = vpop.permute.xlu0 %774
        %776 = vrot.lane.b32.xlu0 %v467, 16
        %v777 = vpop.permute.xlu0 %776
        %778 = vrot.lane.b32.xlu0 %v468, 16
        %v779 = vpop.permute.xlu0 %778
        %780 = vrot.lane.b32.xlu0 %v469, 16
        %v781 = vpop.permute.xlu0 %780
        %814 = vrot.lane.b32.xlu0 %v472, 20
        %v815 = vpop.permute.xlu0 %814
        %816 = vrot.lane.b32.xlu0 %v473, 20
        %v817 = vpop.permute.xlu0 %816
        %818 = vrot.lane.b32.xlu0 %v474, 20
        %v819 = vpop.permute.xlu0 %818
        %820 = vrot.lane.b32.xlu0 %v475, 20
        %v821 = vpop.permute.xlu0 %820
        %822 = vrot.lane.b32.xlu0 %v476, 20
        %v823 = vpop.permute.xlu0 %822
        %824 = vrot.lane.b32.xlu0 %v477, 20
        %v825 = vpop.permute.xlu0 %824
        %826 = vrot.lane.b32.xlu0 %v478, 20
        %v827 = vpop.permute.xlu0 %826
        %828 = vrot.lane.b32.xlu0 %v479, 20
        %v829 = vpop.permute.xlu0 %828
        %830 = vrot.lane.b32.xlu0 %v480, 20
        %v831 = vpop.permute.xlu0 %830
        %832 = vrot.lane.b32.xlu0 %v481, 20
        %v833 = vpop.permute.xlu0 %832
        %834 = vrot.lane.b32.xlu0 %v482, 20
        %v835 = vpop.permute.xlu0 %834
        %836 = vrot.lane.b32.xlu0 %v483, 20
        %v837 = vpop.permute.xlu0 %836
        %838 = vrot.lane.b32.xlu0 %v484, 20
        %v839 = vpop.permute.xlu0 %838
        %840 = vrot.lane.b32.xlu0 %v485, 20
        %v841 = vpop.permute.xlu0 %840
        %842 = vrot.lane.b32.xlu0 %v486, 20
        %v843 = vpop.permute.xlu0 %842
        %844 = vrot.lane.b32.xlu0 %v487, 20
        %v845 = vpop.permute.xlu0 %844
        %878 = vrot.lane.b32.xlu0 %v490, 24
        %v879 = vpop.permute.xlu0 %878
        %880 = vrot.lane.b32.xlu0 %v491, 24
        %v881 = vpop.permute.xlu0 %880
        %882 = vrot.lane.b32.xlu0 %v492, 24
        %v883 = vpop.permute.xlu0 %882
        %884 = vrot.lane.b32.xlu0 %v493, 24
        %v885 = vpop.permute.xlu0 %884
        %886 = vrot.lane.b32.xlu0 %v494, 24
        %v887 = vpop.permute.xlu0 %886
        %888 = vrot.lane.b32.xlu0 %v495, 24
        %v889 = vpop.permute.xlu0 %888
        %890 = vrot.lane.b32.xlu0 %v496, 24
        %v891 = vpop.permute.xlu0 %890
        %892 = vrot.lane.b32.xlu0 %v497, 24
        %v893 = vpop.permute.xlu0 %892
        %894 = vrot.lane.b32.xlu0 %v498, 24
        %v895 = vpop.permute.xlu0 %894
        %896 = vrot.lane.b32.xlu0 %v499, 24
        %v897 = vpop.permute.xlu0 %896
        %898 = vrot.lane.b32.xlu0 %v500, 24
        %v899 = vpop.permute.xlu0 %898
        %900 = vrot.lane.b32.xlu0 %v501, 24
        %v901 = vpop.permute.xlu0 %900
        %902 = vrot.lane.b32.xlu0 %v502, 24
        %v903 = vpop.permute.xlu0 %902
        %904 = vrot.lane.b32.xlu0 %v503, 24
        %v905 = vpop.permute.xlu0 %904
        %906 = vrot.lane.b32.xlu0 %v504, 24
        %v907 = vpop.permute.xlu0 %906
        %908 = vrot.lane.b32.xlu0 %v505, 24
        %v909 = vpop.permute.xlu0 %908
        %942 = vrot.lane.b32.xlu0 %v508, 28
        %v943 = vpop.permute.xlu0 %942
        %944 = vrot.lane.b32.xlu0 %v509, 28
        %v945 = vpop.permute.xlu0 %944
        %946 = vrot.lane.b32.xlu0 %v510, 28
        %v947 = vpop.permute.xlu0 %946
        %948 = vrot.lane.b32.xlu0 %v511, 28
        %v949 = vpop.permute.xlu0 %948
        %950 = vrot.lane.b32.xlu0 %v512, 28
        %v951 = vpop.permute.xlu0 %950
        %952 = vrot.lane.b32.xlu0 %v513, 28
        %v953 = vpop.permute.xlu0 %952
        %954 = vrot.lane.b32.xlu0 %v514, 28
        %v955 = vpop.permute.xlu0 %954
        %956 = vrot.lane.b32.xlu0 %v515, 28
        %v957 = vpop.permute.xlu0 %956
        %958 = vrot.lane.b32.xlu0 %v516, 28
        %v959 = vpop.permute.xlu0 %958
        %960 = vrot.lane.b32.xlu0 %v517, 28
        %v961 = vpop.permute.xlu0 %960
        %962 = vrot.lane.b32.xlu0 %v518, 28
        %v963 = vpop.permute.xlu0 %962
        %964 = vrot.lane.b32.xlu0 %v519, 28
        %v965 = vpop.permute.xlu0 %964
        %966 = vrot.lane.b32.xlu0 %v520, 28
        %v967 = vpop.permute.xlu0 %966
        %968 = vrot.lane.b32.xlu0 %v521, 28
        %v969 = vpop.permute.xlu0 %968
        %970 = vrot.lane.b32.xlu0 %v522, 28
        %v971 = vpop.permute.xlu0 %970
        %972 = vrot.lane.b32.xlu0 %v523, 28
        %v973 = vpop.permute.xlu0 %972
        %1006 = vrot.lane.b32.xlu0 %v526, 32
        %v1007 = vpop.permute.xlu0 %1006
        %1008 = vrot.lane.b32.xlu0 %v527, 32
        %v1009 = vpop.permute.xlu0 %1008
        %1010 = vrot.lane.b32.xlu0 %v528, 32
        %v1011 = vpop.permute.xlu0 %1010
        %1012 = vrot.lane.b32.xlu0 %v529, 32
        %v1013 = vpop.permute.xlu0 %1012
        %1014 = vrot.lane.b32.xlu0 %v530, 32
        %v1015 = vpop.permute.xlu0 %1014
        %1016 = vrot.lane.b32.xlu0 %v531, 32
        %v1017 = vpop.permute.xlu0 %1016
        %1018 = vrot.lane.b32.xlu0 %v532, 32
        %v1019 = vpop.permute.xlu0 %1018
        %1020 = vrot.lane.b32.xlu0 %v533, 32
        %v1021 = vpop.permute.xlu0 %1020
        %1022 = vrot.lane.b32.xlu0 %v534, 32
        %v1023 = vpop.permute.xlu0 %1022
        %1024 = vrot.lane.b32.xlu0 %v535, 32
        %v1025 = vpop.permute.xlu0 %1024
        %1026 = vrot.lane.b32.xlu0 %v536, 32
        %v1027 = vpop.permute.xlu0 %1026
        %1028 = vrot.lane.b32.xlu0 %v537, 32
        %v1029 = vpop.permute.xlu0 %1028
        %1030 = vrot.lane.b32.xlu0 %v538, 32
        %v1031 = vpop.permute.xlu0 %1030
        %1032 = vrot.lane.b32.xlu0 %v539, 32
        %v1033 = vpop.permute.xlu0 %1032
        %1034 = vrot.lane.b32.xlu0 %v540, 32
        %v1035 = vpop.permute.xlu0 %1034
        %1036 = vrot.lane.b32.xlu0 %v541, 32
        %v1037 = vpop.permute.xlu0 %1036
        %vm1054 = vcmask 31744
        %v1055 = vsel %vm1054, %v382, %v559
        %v1056 = vsel %vm1054, %v383, %v561
        %v1057 = vsel %vm1054, %v384, %v563
        %v1058 = vsel %vm1054, %v385, %v565
        %v1059 = vsel %vm1054, %v386, %v567
        %v1060 = vsel %vm1054, %v387, %v569
        %v1061 = vsel %vm1054, %v388, %v571
        %v1062 = vsel %vm1054, %v389, %v573
        %v1063 = vsel %vm1054, %v390, %v575
        %v1064 = vsel %vm1054, %v391, %v577
        %v1065 = vsel %vm1054, %v392, %v579
        %v1066 = vsel %vm1054, %v393, %v581
        %v1067 = vsel %vm1054, %v394, %v583
        %v1068 = vsel %vm1054, %v395, %v585
        %v1069 = vsel %vm1054, %v396, %v587
        %v1070 = vsel %vm1054, %v397, %v589
        %vm1071 = vcmask 64512
        %v1072 = vsel %vm1071, %v1055, %v623
        %v1073 = vsel %vm1071, %v1056, %v625
        %v1074 = vsel %vm1071, %v1057, %v627
        %v1075 = vsel %vm1071, %v1058, %v629
        %v1076 = vsel %vm1071, %v1059, %v631
        %v1077 = vsel %vm1071, %v1060, %v633
        %v1078 = vsel %vm1071, %v1061, %v635
        %v1079 = vsel %vm1071, %v1062, %v637
        %v1080 = vsel %vm1071, %v1063, %v639
        %v1081 = vsel %vm1071, %v1064, %v641
        %v1082 = vsel %vm1071, %v1065, %v643
        %v1083 = vsel %vm1071, %v1066, %v645
        %v1084 = vsel %vm1071, %v1067, %v647
        %v1085 = vsel %vm1071, %v1068, %v649
        %v1086 = vsel %vm1071, %v1069, %v651
        %v1087 = vsel %vm1071, %v1070, %v653
        %vm1088 = vcmask 97280
        %v1089 = vsel %vm1088, %v1072, %v687
        %v1090 = vsel %vm1088, %v1073, %v689
        %v1091 = vsel %vm1088, %v1074, %v691
        %v1092 = vsel %vm1088, %v1075, %v693
        %v1093 = vsel %vm1088, %v1076, %v695
        %v1094 = vsel %vm1088, %v1077, %v697
        %v1095 = vsel %vm1088, %v1078, %v699
        %v1096 = vsel %vm1088, %v1079, %v701
        %v1097 = vsel %vm1088, %v1080, %v703
        %v1098 = vsel %vm1088, %v1081, %v705
        %v1099 = vsel %vm1088, %v1082, %v707
        %v1100 = vsel %vm1088, %v1083, %v709
        %v1101 = vsel %vm1088, %v1084, %v711
        %v1102 = vsel %vm1088, %v1085, %v713
        %v1103 = vsel %vm1088, %v1086, %v715
        %v1104 = vsel %vm1088, %v1087, %v717
        %vm1105 = vcmask 130048
        %v1106 = vsel %vm1105, %v1089, %v751
        %v1107 = vsel %vm1105, %v1090, %v753
        %v1108 = vsel %vm1105, %v1091, %v755
        %v1109 = vsel %vm1105, %v1092, %v757
        %v1110 = vsel %vm1105, %v1093, %v759
        %v1111 = vsel %vm1105, %v1094, %v761
        %v1112 = vsel %vm1105, %v1095, %v763
        %v1113 = vsel %vm1105, %v1096, %v765
        %v1114 = vsel %vm1105, %v1097, %v767
        %v1115 = vsel %vm1105, %v1098, %v769
        %v1116 = vsel %vm1105, %v1099, %v771
        %v1117 = vsel %vm1105, %v1100, %v773
        %v1118 = vsel %vm1105, %v1101, %v775
        %v1119 = vsel %vm1105, %v1102, %v777
        %v1120 = vsel %vm1105, %v1103, %v779
        %v1121 = vsel %vm1105, %v1104, %v781
        %vm1122 = vcmask 162816
        %v1123 = vsel %vm1122, %v1106, %v815
        %v1124 = vsel %vm1122, %v1107, %v817
        %v1125 = vsel %vm1122, %v1108, %v819
        %v1126 = vsel %vm1122, %v1109, %v821
        %v1127 = vsel %vm1122, %v1110, %v823
        %v1128 = vsel %vm1122, %v1111, %v825
        %v1129 = vsel %vm1122, %v1112, %v827
        %v1130 = vsel %vm1122, %v1113, %v829
        %v1131 = vsel %vm1122, %v1114, %v831
        %v1132 = vsel %vm1122, %v1115, %v833
        %v1133 = vsel %vm1122, %v1116, %v835
        %v1134 = vsel %vm1122, %v1117, %v837
        %v1135 = vsel %vm1122, %v1118, %v839
        %v1136 = vsel %vm1122, %v1119, %v841
        %v1137 = vsel %vm1122, %v1120, %v843
        %v1138 = vsel %vm1122, %v1121, %v845
        %vm1139 = vcmask 195584
        %v1140 = vsel %vm1139, %v1123, %v879
        %v1141 = vsel %vm1139, %v1124, %v881
        %v1142 = vsel %vm1139, %v1125, %v883
        %v1143 = vsel %vm1139, %v1126, %v885
        %v1144 = vsel %vm1139, %v1127, %v887
        %v1145 = vsel %vm1139, %v1128, %v889
        %v1146 = vsel %vm1139, %v1129, %v891
        %v1147 = vsel %vm1139, %v1130, %v893
        %v1148 = vsel %vm1139, %v1131, %v895
        %v1149 = vsel %vm1139, %v1132, %v897
        %v1150 = vsel %vm1139, %v1133, %v899
        %v1151 = vsel %vm1139, %v1134, %v901
        %v1152 = vsel %vm1139, %v1135, %v903
        %v1153 = vsel %vm1139, %v1136, %v905
        %v1154 = vsel %vm1139, %v1137, %v907
        %v1155 = vsel %vm1139, %v1138, %v909
        %vm1156 = vcmask 228352
        %v1157 = vsel %vm1156, %v1140, %v943
        %v1158 = vsel %vm1156, %v1141, %v945
        %v1159 = vsel %vm1156, %v1142, %v947
        %v1160 = vsel %vm1156, %v1143, %v949
        %v1161 = vsel %vm1156, %v1144, %v951
        %v1162 = vsel %vm1156, %v1145, %v953
        %v1163 = vsel %vm1156, %v1146, %v955
        %v1164 = vsel %vm1156, %v1147, %v957
        %v1165 = vsel %vm1156, %v1148, %v959
        %v1166 = vsel %vm1156, %v1149, %v961
        %v1167 = vsel %vm1156, %v1150, %v963
        %v1168 = vsel %vm1156, %v1151, %v965
        %v1169 = vsel %vm1156, %v1152, %v967
        %v1170 = vsel %vm1156, %v1153, %v969
        %v1171 = vsel %vm1156, %v1154, %v971
        %v1172 = vsel %vm1156, %v1155, %v973
        %vm1173 = vcmask 261120
        %v1174 = vsel %vm1173, %v1157, %v1007
        %v1175 = vsel %vm1173, %v1158, %v1009
        %v1176 = vsel %vm1173, %v1159, %v1011
        %v1177 = vsel %vm1173, %v1160, %v1013
        %v1178 = vsel %vm1173, %v1161, %v1015
        %v1179 = vsel %vm1173, %v1162, %v1017
        %v1180 = vsel %vm1173, %v1163, %v1019
        %v1181 = vsel %vm1173, %v1164, %v1021
        %v1182 = vsel %vm1173, %v1165, %v1023
        %v1183 = vsel %vm1173, %v1166, %v1025
        %v1184 = vsel %vm1173, %v1167, %v1027
        %v1185 = vsel %vm1173, %v1168, %v1029
        %v1186 = vsel %vm1173, %v1169, %v1031
        %v1187 = vsel %vm1173, %v1170, %v1033
        %v1188 = vsel %vm1173, %v1171, %v1035
        %v1189 = vsel %vm1173, %v1172, %v1037
        %v1190 = vld [vmem:[%s2] sm:$0xff]
        %v1191 = vld [vmem:[%s2 + $0x8] sm:$0xff]
        %v1192 = vld [vmem:[%s2 + $0x10] sm:$0xff]
        %v1193 = vld [vmem:[%s2 + $0x18] sm:$0xff]
        %v1194 = vld [vmem:[%s2 + $0x20] sm:$0xf]
        %v1195 = vld [vmem:[%s3] sm:$0x1]
        %v1197 = vlaneseq
        %v1198 = vshrl.u32 %v1197, 7
        %v1199 = vsub.s32 0, %v1198
        %v1200 = vrot.slane %v1195, %v1199
        %vm1202 = vcmask 293888
        %v1204 = vsel %vm1202, %v1174, 0
        %v1207 = vsel %vm1202, %v1175, 0
        %v1210 = vsel %vm1202, %v1176, 0
        %v1213 = vsel %vm1202, %v1177, 0
        %v1216 = vsel %vm1202, %v1178, 0
        %v1219 = vsel %vm1202, %v1179, 0
        %v1222 = vsel %vm1202, %v1180, 0
        %v1225 = vsel %vm1202, %v1181, 0
        %v1228 = vsel %vm1202, %v1182, 0
        %v1231 = vsel %vm1202, %v1183, 0
        %v1234 = vsel %vm1202, %v1184, 0
        %v1237 = vsel %vm1202, %v1185, 0
        %v1240 = vsel %vm1202, %v1186, 0
        %v1243 = vsel %vm1202, %v1187, 0
        %v1246 = vsel %vm1202, %v1188, 0
        %v1249 = vsel %vm1202, %v1189, 0
        %vm1251 = vcmask 1043456
        %v1253 = vsel %vm1251, %v1194, 0
        %1255 = vmatprep.subr.mxu0 0.0
        %1256 = vmatpush1.msra.mxu0 %v1190
        %1257 = vmatprep.subr.mxu0 0.0
        %1258 = vmatpush1.msra.mxu0 %v1191
        %1259 = vmatprep.subr.mxu0 0.0
        %1260 = vmatpush1.msra.mxu0 %v1192
        %1261 = vmatprep.subr.mxu0 0.0
        %1262 = vmatpush1.msra.mxu0 %v1193
        %1263 = vmatprep.subr.mxu0 0.0
        %1264 = vmatpush1.msra.mxu0 %v1253
        %1265 = vmatprep.subr.mxu0 0.0
        %1266 = vmatpush1.msra.mxu0 0.0
        %1267 = vmatprep.subr.mxu0 0.0
        %1268 = vmatpush1.msra.mxu0 0.0
        %1269 = vmatprep.subr.mxu0 0.0
        %1270 = vmatpush1.msra.mxu0 0.0
        %1271 = vmatprep.subr.mxu0 0.0
        %1272 = vmatpush1.msra.mxu0 0.0
        %1273 = vmatprep.subr.mxu0 0.0
        %1274 = vmatpush1.msra.mxu0 0.0
        %1275 = vmatprep.subr.mxu0 0.0
        %1276 = vmatpush1.msra.mxu0 0.0
        %1277 = vmatprep.subr.mxu0 0.0
        %1278 = vmatpush1.msra.mxu0 0.0
        %1279 = vmatprep.subr.mxu0 0.0
        %1280 = vmatpush1.msra.mxu0 0.0
        %1281 = vmatprep.subr.mxu0 0.0
        %1282 = vmatpush1.msra.mxu0 0.0
        %1283 = vmatprep.subr.mxu0 0.0
        %1284 = vmatpush1.msra.mxu0 0.0
        %1285 = vmatprep.subr.mxu0 0.0
        %1286 = vmatpush1.msra.mxu0 0.0
        %1287 = vmatprep.subr.mxu0 0.0
        %1288 = vmatpush1.msra.mxu0 0.0
        %1289 = vmatprep.subr.mxu0 0.0
        %1290 = vmatpush1.msra.mxu0 0.0
        %1291 = vmatprep.subr.mxu0 0.0
        %1292 = vmatpush1.msra.mxu0 0.0
        %1293 = vmatprep.subr.mxu0 0.0
        %1294 = vmatpush1.msra.mxu0 0.0
        %1295 = vmatprep.subr.mxu0 0.0
        %1296 = vmatpush1.msra.mxu0 0.0
        %1297 = vmatprep.subr.mxu0 0.0
        %1298 = vmatpush1.msra.mxu0 0.0
        %1299 = vmatprep.subr.mxu0 0.0
        %1300 = vmatpush1.msra.mxu0 0.0
        %1301 = vmatprep.subr.mxu0 0.0
        %1302 = vmatpush1.msra.mxu0 0.0
        %1303 = vmatprep.subr.mxu0 0.0
        %1304 = vmatpush1.msra.mxu0 0.0
        %1305 = vmatprep.subr.mxu0 0.0
        %1306 = vmatpush1.msra.mxu0 0.0
        %1307 = vmatprep.subr.mxu0 0.0
        %1308 = vmatpush1.msra.mxu0 0.0
        %1309 = vmatprep.subr.mxu0 0.0
        %1310 = vmatpush1.msra.mxu0 0.0
        %1311 = vmatprep.subr.mxu0 0.0
        %1312 = vmatpush1.msra.mxu0 0.0
        %1313 = vmatprep.subr.mxu0 0.0
        %1314 = vmatpush1.msra.mxu0 0.0
        %1315 = vmatprep.subr.mxu0 0.0
        %1316 = vmatpush1.msra.mxu0 0.0
        %1317 = vmatprep.subr.mxu0 0.0
        %1318 = vmatpush1.msra.mxu0 0.0
        %1319 = vmatprep.mubr.f32.mxu0 0.0
        %1320 = vmatmul.mubr.f32.gmra.mrb[0].mxu0 %v1204
        %v1321 = vpop.f32.mrb[0].mxu0
        %v1322 = vadd.f32 %v1200, %v1321
        %v1323 = vpop.f32.mrb[0].mxu0
        %1324 = vmatprep.mubr.f32.mxu0 0.0
        %1325 = vmatmul.mubr.f32.gmra.mrb[0].mxu0 %v1207
        %v1326 = vpop.f32.mrb[0].mxu0
        %v1327 = vadd.f32 %v1200, %v1326
        %v1328 = vpop.f32.mrb[0].mxu0
        %1329 = vmatprep.mubr.f32.mxu0 0.0
        %1330 = vmatmul.mubr.f32.gmra.mrb[0].mxu0 %v1210
        %v1331 = vpop.f32.mrb[0].mxu0
        %v1332 = vadd.f32 %v1200, %v1331
        %v1333 = vpop.f32.mrb[0].mxu0
        %1334 = vmatprep.mubr.f32.mxu0 0.0
        %1335 = vmatmul.mubr.f32.gmra.mrb[0].mxu0 %v1213
        %v1336 = vpop.f32.mrb[0].mxu0
        %v1337 = vadd.f32 %v1200, %v1336
        %v1338 = vpop.f32.mrb[0].mxu0
        %1339 = vmatprep.mubr.f32.mxu0 0.0
        %1340 = vmatmul.mubr.f32.gmra.mrb[0].mxu0 %v1216
        %v1341 = vpop.f32.mrb[0].mxu0
        %v1342 = vadd.f32 %v1200, %v1341
        %v1343 = vpop.f32.mrb[0].mxu0
        %1344 = vmatprep.mubr.f32.mxu0 0.0
        %1345 = vmatmul.mubr.f32.gmra.mrb[0].mxu0 %v1219
        %v1346 = vpop.f32.mrb[0].mxu0
        %v1347 = vadd.f32 %v1200, %v1346
        %v1348 = vpop.f32.mrb[0].mxu0
        %1349 = vmatprep.mubr.f32.mxu0 0.0
        %1350 = vmatmul.mubr.f32.gmra.mrb[0].mxu0 %v1222
        %v1351 = vpop.f32.mrb[0].mxu0
        %v1352 = vadd.f32 %v1200, %v1351
        %v1353 = vpop.f32.mrb[0].mxu0
        %1354 = vmatprep.mubr.f32.mxu0 0.0
        %1355 = vmatmul.mubr.f32.gmra.mrb[0].mxu0 %v1225
        %v1356 = vpop.f32.mrb[0].mxu0
        %v1357 = vadd.f32 %v1200, %v1356
        %v1358 = vpop.f32.mrb[0].mxu0
        %1359 = vmatprep.mubr.f32.mxu0 0.0
        %1360 = vmatmul.mubr.f32.gmra.mrb[0].mxu0 %v1228
        %v1361 = vpop.f32.mrb[0].mxu0
        %v1362 = vadd.f32 %v1200, %v1361
        %v1363 = vpop.f32.mrb[0].mxu0
        %1364 = vmatprep.mubr.f32.mxu0 0.0
        %1365 = vmatmul.mubr.f32.gmra.mrb[0].mxu0 %v1231
        %v1366 = vpop.f32.mrb[0].mxu0
        %v1367 = vadd.f32 %v1200, %v1366
        %v1368 = vpop.f32.mrb[0].mxu0
        %1369 = vmatprep.mubr.f32.mxu0 0.0
        %1370 = vmatmul.mubr.f32.gmra.mrb[0].mxu0 %v1234
        %v1371 = vpop.f32.mrb[0].mxu0
        %v1372 = vadd.f32 %v1200, %v1371
        %v1373 = vpop.f32.mrb[0].mxu0
        %1374 = vmatprep.mubr.f32.mxu0 0.0
        %1375 = vmatmul.mubr.f32.gmra.mrb[0].mxu0 %v1237
        %v1376 = vpop.f32.mrb[0].mxu0
        %v1377 = vadd.f32 %v1200, %v1376
        %v1378 = vpop.f32.mrb[0].mxu0
        %1379 = vmatprep.mubr.f32.mxu0 0.0
        %1380 = vmatmul.mubr.f32.gmra.mrb[0].mxu0 %v1240
        %v1381 = vpop.f32.mrb[0].mxu0
        %v1382 = vadd.f32 %v1200, %v1381
        %v1383 = vpop.f32.mrb[0].mxu0
        %1384 = vmatprep.mubr.f32.mxu0 0.0
        %1385 = vmatmul.mubr.f32.gmra.mrb[0].mxu0 %v1243
        %v1386 = vpop.f32.mrb[0].mxu0
        %v1387 = vadd.f32 %v1200, %v1386
        %v1388 = vpop.f32.mrb[0].mxu0
        %1389 = vmatprep.mubr.f32.mxu0 0.0
        %1390 = vmatmul.mubr.f32.gmra.mrb[0].mxu0 %v1246
        %v1391 = vpop.f32.mrb[0].mxu0
        %v1392 = vadd.f32 %v1200, %v1391
        %v1393 = vpop.f32.mrb[0].mxu0
        %1394 = vmatprep.mubr.f32.mxu0 0.0
        %1395 = vmatmul.mubr.f32.gmra.mrb[0].mxu0 %v1249
        %v1396 = vpop.f32.mrb[0].mxu0
        %v1397 = vadd.f32 %v1200, %v1396
        %v1398 = vpop.f32.mrb[0].mxu0
        %1399 = vdwg.mxu0
        %v1400 = vmax.f32 %v1322, 0.0
        %v1401 = vmax.f32 %v1327, 0.0
        %v1402 = vmax.f32 %v1332, 0.0
        %v1403 = vmax.f32 %v1337, 0.0
        %v1404 = vmax.f32 %v1342, 0.0
        %v1405 = vmax.f32 %v1347, 0.0
        %v1406 = vmax.f32 %v1352, 0.0
        %v1407 = vmax.f32 %v1357, 0.0
        %v1408 = vmax.f32 %v1362, 0.0
        %v1409 = vmax.f32 %v1367, 0.0
        %v1410 = vmax.f32 %v1372, 0.0
        %v1411 = vmax.f32 %v1377, 0.0
        %v1412 = vmax.f32 %v1382, 0.0
        %v1413 = vmax.f32 %v1387, 0.0
        %v1414 = vmax.f32 %v1392, 0.0
        %v1415 = vmax.f32 %v1397, 0.0
        %v1416 = vld [vmem:[#allocation2] sm:$0x1]
        %v1417 = vld [vmem:[%s372] sm:$0xff]
        %v1418 = vld [vmem:[%s372 + $0x8] sm:$0xff]
        %v1419 = vld [vmem:[%s372 + $0x10] sm:$0xff]
        %v1420 = vld [vmem:[%s372 + $0x18] sm:$0xff]
        %v1421 = vld [vmem:[%s372 + $0x20] sm:$0xff]
        %v1422 = vld [vmem:[%s372 + $0x28] sm:$0xff]
        %v1423 = vld [vmem:[%s372 + $0x30] sm:$0xff]
        %v1424 = vld [vmem:[%s372 + $0x38] sm:$0xff]
        %v1425 = vld [vmem:[%s372 + $0x40] sm:$0xff]
        %v1426 = vld [vmem:[%s372 + $0x48] sm:$0xff]
        %v1427 = vld [vmem:[%s372 + $0x50] sm:$0xff]
        %v1428 = vld [vmem:[%s372 + $0x58] sm:$0xff]
        %v1429 = vld [vmem:[%s372 + $0x60] sm:$0xff]
        %v1430 = vld [vmem:[%s372 + $0x68] sm:$0xff]
        %v1431 = vld [vmem:[%s372 + $0x70] sm:$0xff]
        %v1432 = vld [vmem:[%s372 + $0x78] sm:$0xff]
        %1434 = vset.pattern.permute.xlu0 0
        %1435 = vperm.xlu0 %1434, %v1417
        %v1436 = vpop.permute.xlu0 %1435
        %1439 = vset.pattern.permute.xlu0 0
        %1440 = vperm.xlu0 %1439, %v1418
        %v1441 = vpop.permute.xlu0 %1440
        %1444 = vset.pattern.permute.xlu0 0
        %1445 = vperm.xlu0 %1444, %v1419
        %v1446 = vpop.permute.xlu0 %1445
        %1449 = vset.pattern.permute.xlu0 0
        %1450 = vperm.xlu0 %1449, %v1420
        %v1451 = vpop.permute.xlu0 %1450
        %1454 = vset.pattern.permute.xlu0 0
        %1455 = vperm.xlu0 %1454, %v1421
        %v1456 = vpop.permute.xlu0 %1455
        %1459 = vset.pattern.permute.xlu0 0
        %1460 = vperm.xlu0 %1459, %v1422
        %v1461 = vpop.permute.xlu0 %1460
        %1464 = vset.pattern.permute.xlu0 0
        %1465 = vperm.xlu0 %1464, %v1423
        %v1466 = vpop.permute.xlu0 %1465
        %1469 = vset.pattern.permute.xlu0 0
        %1470 = vperm.xlu0 %1469, %v1424
        %v1471 = vpop.permute.xlu0 %1470
        %1474 = vset.pattern.permute.xlu0 0
        %1475 = vperm.xlu0 %1474, %v1425
        %v1476 = vpop.permute.xlu0 %1475
        %1479 = vset.pattern.permute.xlu0 0
        %1480 = vperm.xlu0 %1479, %v1426
        %v1481 = vpop.permute.xlu0 %1480
        %1484 = vset.pattern.permute.xlu0 0
        %1485 = vperm.xlu0 %1484, %v1427
        %v1486 = vpop.permute.xlu0 %1485
        %1489 = vset.pattern.permute.xlu0 0
        %1490 = vperm.xlu0 %1489, %v1428
        %v1491 = vpop.permute.xlu0 %1490
        %1494 = vset.pattern.permute.xlu0 0
        %1495 = vperm.xlu0 %1494, %v1429
        %v1496 = vpop.permute.xlu0 %1495
        %1499 = vset.pattern.permute.xlu0 0
        %1500 = vperm.xlu0 %1499, %v1430
        %v1501 = vpop.permute.xlu0 %1500
        %1504 = vset.pattern.permute.xlu0 0
        %1505 = vperm.xlu0 %1504, %v1431
        %v1506 = vpop.permute.xlu0 %1505
        %1509 = vset.pattern.permute.xlu0 0
        %1510 = vperm.xlu0 %1509, %v1432
        %v1511 = vpop.permute.xlu0 %1510
        %v1513 = vmul.f32 %v1400, %v1436
        %v1514 = vmul.f32 %v1401, %v1441
        %v1515 = vmul.f32 %v1402, %v1446
        %v1516 = vmul.f32 %v1403, %v1451
        %v1517 = vmul.f32 %v1404, %v1456
        %v1518 = vmul.f32 %v1405, %v1461
        %v1519 = vmul.f32 %v1406, %v1466
        %v1520 = vmul.f32 %v1407, %v1471
        %v1521 = vmul.f32 %v1408, %v1476
        %v1522 = vmul.f32 %v1409, %v1481
        %v1523 = vmul.f32 %v1410, %v1486
        %v1524 = vmul.f32 %v1411, %v1491
        %v1525 = vmul.f32 %v1412, %v1496
        %v1526 = vmul.f32 %v1413, %v1501
        %v1527 = vmul.f32 %v1414, %v1506
        %v1528 = vmul.f32 %v1415, %v1511
        %v1529 = vsel %vm1071, %v1513, 0.0
        %v1530 = vsel %vm1071, %v1514, 0.0
        %v1531 = vadd.f32 %v1529, %v1530
        %v1532 = vsel %vm1071, %v1515, 0.0
        %v1533 = vadd.f32 %v1531, %v1532
        %v1534 = vsel %vm1071, %v1516, 0.0
        %v1535 = vadd.f32 %v1533, %v1534
        %v1536 = vsel %vm1071, %v1517, 0.0
        %v1537 = vadd.f32 %v1535, %v1536
        %v1538 = vsel %vm1071, %v1518, 0.0
        %v1539 = vadd.f32 %v1537, %v1538
        %v1540 = vsel %vm1071, %v1519, 0.0
        %v1541 = vadd.f32 %v1539, %v1540
        %v1542 = vsel %vm1071, %v1520, 0.0
        %v1543 = vadd.f32 %v1541, %v1542
        %v1544 = vsel %vm1071, %v1521, 0.0
        %v1545 = vadd.f32 %v1543, %v1544
        %v1546 = vsel %vm1071, %v1522, 0.0
        %v1547 = vadd.f32 %v1545, %v1546
        %v1548 = vsel %vm1071, %v1523, 0.0
        %v1549 = vadd.f32 %v1547, %v1548
        %v1550 = vsel %vm1071, %v1524, 0.0
        %v1551 = vadd.f32 %v1549, %v1550
        %v1552 = vsel %vm1071, %v1525, 0.0
        %v1553 = vadd.f32 %v1551, %v1552
        %v1554 = vsel %vm1071, %v1526, 0.0
        %v1555 = vadd.f32 %v1553, %v1554
        %v1556 = vsel %vm1071, %v1527, 0.0
        %v1557 = vadd.f32 %v1555, %v1556
        %v1558 = vsel %vm1071, %v1528, 0.0
        %v1559 = vadd.f32 %v1557, %v1558
        %v1560 = vrot.slane %v1559, 4
        %v1561 = vadd.f32 %v1559, %v1560
        %v1562 = vrot.slane %v1561, 2
        %v1563 = vadd.f32 %v1561, %v1562
        %v1564 = vrot.slane %v1563, 1
        %v1565 = vadd.f32 %v1563, %v1564
        %v1566 = vadd.f32 %v1416, %v1565
        %vm1567 = vcmask 57344
        %1568 = vst.msk [vmem:[#allocation2] sm:$0x1] %vm1567, %v1566
        %p1569 = scmp.eq.s32.totalorder %s32, 2
        // Predicated region
        $region57: #{tpu_custom_call.1} parent=51 // pred_check
          %p1570 = pneg %p1569
        $region58: #{tpu_custom_call.1} parent=51 // pred_check_branch
          %1572 = sbr.rel (%p1570) target = $region60
        $region59: #{tpu_custom_call.1} parent=51 // pred_region
          %v1573 = vld [vmem:[#allocation2] sm:$0x1]
          %v1574 = vmul.f32 %v1573, 0.00390625
          %v1575 = vld [vmem:[%s4] sm:$0xff]
          %v1576 = vld [vmem:[%s5] sm:$0x1]
          %v1578 = vsel %vm1071, %v1574, 0
          %1580 = vmatprep.subr.mxu0 0.0
          %1581 = vmatpush1.msra.mxu0 %v1575
          %1582 = vmatprep.subr.mxu0 0.0
          %1583 = vmatpush1.msra.mxu0 0.0
          %1584 = vmatprep.subr.mxu0 0.0
          %1585 = vmatpush1.msra.mxu0 0.0
          %1586 = vmatprep.subr.mxu0 0.0
          %1587 = vmatpush1.msra.mxu0 0.0
          %1588 = vmatprep.subr.mxu0 0.0
          %1589 = vmatpush1.msra.mxu0 0.0
          %1590 = vmatprep.subr.mxu0 0.0
          %1591 = vmatpush1.msra.mxu0 0.0
          %1592 = vmatprep.subr.mxu0 0.0
          %1593 = vmatpush1.msra.mxu0 0.0
          %1594 = vmatprep.subr.mxu0 0.0
          %1595 = vmatpush1.msra.mxu0 0.0
          %1596 = vmatprep.subr.mxu0 0.0
          %1597 = vmatpush1.msra.mxu0 0.0
          %1598 = vmatprep.subr.mxu0 0.0
          %1599 = vmatpush1.msra.mxu0 0.0
          %1600 = vmatprep.subr.mxu0 0.0
          %1601 = vmatpush1.msra.mxu0 0.0
          %1602 = vmatprep.subr.mxu0 0.0
          %1603 = vmatpush1.msra.mxu0 0.0
          %1604 = vmatprep.subr.mxu0 0.0
          %1605 = vmatpush1.msra.mxu0 0.0
          %1606 = vmatprep.subr.mxu0 0.0
          %1607 = vmatpush1.msra.mxu0 0.0
          %1608 = vmatprep.subr.mxu0 0.0
          %1609 = vmatpush1.msra.mxu0 0.0
          %1610 = vmatprep.subr.mxu0 0.0
          %1611 = vmatpush1.msra.mxu0 0.0
          %1612 = vmatprep.subr.mxu0 0.0
          %1613 = vmatpush1.msra.mxu0 0.0
          %1614 = vmatprep.subr.mxu0 0.0
          %1615 = vmatpush1.msra.mxu0 0.0
          %1616 = vmatprep.subr.mxu0 0.0
          %1617 = vmatpush1.msra.mxu0 0.0
          %1618 = vmatprep.subr.mxu0 0.0
          %1619 = vmatpush1.msra.mxu0 0.0
          %1620 = vmatprep.subr.mxu0 0.0
          %1621 = vmatpush1.msra.mxu0 0.0
          %1622 = vmatprep.subr.mxu0 0.0
          %1623 = vmatpush1.msra.mxu0 0.0
          %1624 = vmatprep.subr.mxu0 0.0
          %1625 = vmatpush1.msra.mxu0 0.0
          %1626 = vmatprep.subr.mxu0 0.0
          %1627 = vmatpush1.msra.mxu0 0.0
          %1628 = vmatprep.subr.mxu0 0.0
          %1629 = vmatpush1.msra.mxu0 0.0
          %1630 = vmatprep.subr.mxu0 0.0
          %1631 = vmatpush1.msra.mxu0 0.0
          %1632 = vmatprep.subr.mxu0 0.0
          %1633 = vmatpush1.msra.mxu0 0.0
          %1634 = vmatprep.subr.mxu0 0.0
          %1635 = vmatpush1.msra.mxu0 0.0
          %1636 = vmatprep.subr.mxu0 0.0
          %1637 = vmatpush1.msra.mxu0 0.0
          %1638 = vmatprep.subr.mxu0 0.0
          %1639 = vmatpush1.msra.mxu0 0.0
          %1640 = vmatprep.subr.mxu0 0.0
          %1641 = vmatpush1.msra.mxu0 0.0
          %1642 = vmatprep.subr.mxu0 0.0
          %1643 = vmatpush1.msra.mxu0 0.0
          %1644 = vmatprep.mubr.f32.mxu0 0.0
          %1645 = vmatmul.mubr.f32.gmra.mrb[0].mxu0 %v1578
          %v1646 = vpop.f32.mrb[0].mxu0
          %v1647 = vadd.f32 %v1576, %v1646
          %v1648 = vpop.f32.mrb[0].mxu0
          %1649 = vdwg.mxu0
          %v1650 = vld [vmem:[%s6] sm:$0xff]
          %v1651 = vld [vmem:[%s6 + $0x8] sm:$0xff]
          %v1652 = vld [vmem:[%s6 + $0x10] sm:$0xff]
          %v1653 = vld [vmem:[%s6 + $0x18] sm:$0xff]
          %v1654 = vld [vmem:[%s6 + $0x20] sm:$0xff]
          %v1655 = vld [vmem:[%s6 + $0x28] sm:$0xff]
          %v1656 = vld [vmem:[%s6 + $0x30] sm:$0xff]
          %v1657 = vld [vmem:[%s6 + $0x38] sm:$0xff]
          %v1658 = vld [vmem:[%s6 + $0x40] sm:$0xff]
          %v1659 = vld [vmem:[%s6 + $0x48] sm:$0xff]
          %v1660 = vld [vmem:[%s6 + $0x50] sm:$0xff]
          %v1661 = vld [vmem:[%s6 + $0x58] sm:$0xff]
          %v1662 = vld [vmem:[%s6 + $0x60] sm:$0xff]
          %v1663 = vld [vmem:[%s6 + $0x68] sm:$0xff]
          %v1664 = vld [vmem:[%s6 + $0x70] sm:$0xff]
          %v1665 = vld [vmem:[%s6 + $0x78] sm:$0xff]
          %v1666 = vld [vmem:[%s7] sm:$0x1]
          %1667 = vmatprep.subr.mxu0 0.0
          %1668 = vmatpush1.msra.mxu0 %v1650
          %1669 = vmatprep.subr.mxu0 0.0
          %1670 = vmatpush1.msra.mxu0 %v1651
          %1671 = vmatprep.subr.mxu0 0.0
          %1672 = vmatpush1.msra.mxu0 %v1652
          %1673 = vmatprep.subr.mxu0 0.0
          %1674 = vmatpush1.msra.mxu0 %v1653
          %1675 = vmatprep.subr.mxu0 0.0
          %1676 = vmatpush1.msra.mxu0 %v1654
          %1677 = vmatprep.subr.mxu0 0.0
          %1678 = vmatpush1.msra.mxu0 %v1655
          %1679 = vmatprep.subr.mxu0 0.0
          %1680 = vmatpush1.msra.mxu0 %v1656
          %1681 = vmatprep.subr.mxu0 0.0
          %1682 = vmatpush1.msra.mxu0 %v1657
          %1683 = vmatprep.subr.mxu0 0.0
          %1684 = vmatpush1.msra.mxu0 %v1658
          %1685 = vmatprep.subr.mxu0 0.0
          %1686 = vmatpush1.msra.mxu0 %v1659
          %1687 = vmatprep.subr.mxu0 0.0
          %1688 = vmatpush1.msra.mxu0 %v1660
          %1689 = vmatprep.subr.mxu0 0.0
          %1690 = vmatpush1.msra.mxu0 %v1661
          %1691 = vmatprep.subr.mxu0 0.0
          %1692 = vmatpush1.msra.mxu0 %v1662
          %1693 = vmatprep.subr.mxu0 0.0
          %1694 = vmatpush1.msra.mxu0 %v1663
          %1695 = vmatprep.subr.mxu0 0.0
          %1696 = vmatpush1.msra.mxu0 %v1664
          %1697 = vmatprep.subr.mxu0 0.0
          %1698 = vmatpush1.msra.mxu0 %v1665
          %1699 = vmatprep.subr.mxu0 0.0
          %1700 = vmatpush1.msra.mxu0 0.0
          %1701 = vmatprep.subr.mxu0 0.0
          %1702 = vmatpush1.msra.mxu0 0.0
          %1703 = vmatprep.subr.mxu0 0.0
          %1704 = vmatpush1.msra.mxu0 0.0
          %1705 = vmatprep.subr.mxu0 0.0
          %1706 = vmatpush1.msra.mxu0 0.0
          %1707 = vmatprep.subr.mxu0 0.0
          %1708 = vmatpush1.msra.mxu0 0.0
          %1709 = vmatprep.subr.mxu0 0.0
          %1710 = vmatpush1.msra.mxu0 0.0
          %1711 = vmatprep.subr.mxu0 0.0
          %1712 = vmatpush1.msra.mxu0 0.0
          %1713 = vmatprep.subr.mxu0 0.0
          %1714 = vmatpush1.msra.mxu0 0.0
          %1715 = vmatprep.subr.mxu0 0.0
          %1716 = vmatpush1.msra.mxu0 0.0
          %1717 = vmatprep.subr.mxu0 0.0
          %1718 = vmatpush1.msra.mxu0 0.0
          %1719 = vmatprep.subr.mxu0 0.0
          %1720 = vmatpush1.msra.mxu0 0.0
          %1721 = vmatprep.subr.mxu0 0.0
          %1722 = vmatpush1.msra.mxu0 0.0
          %1723 = vmatprep.subr.mxu0 0.0
          %1724 = vmatpush1.msra.mxu0 0.0
          %1725 = vmatprep.subr.mxu0 0.0
          %1726 = vmatpush1.msra.mxu0 0.0
          %1727 = vmatprep.subr.mxu0 0.0
          %1728 = vmatpush1.msra.mxu0 0.0
          %1729 = vmatprep.subr.mxu0 0.0
          %1730 = vmatpush1.msra.mxu0 0.0
          %1731 = vmatprep.mubr.f32.mxu0 0.0
          %1732 = vmatmul.mubr.f32.gmra.mrb[0].mxu0 %v1647
          %v1733 = vpop.f32.mrb[0].mxu0
          %v1734 = vadd.f32 %v1666, %v1733
          %v1735 = vpop.f32.mrb[0].mxu0
          %1736 = vdwg.mxu0
          %1737 = vst [vmem:[%s362] sm:$0x1] %v1647
          %vm1738 = vcmask 122880
          %1739 = vst.msk [vmem:[%s356] sm:$0x1] %vm1738, %v1734
        $region60: #{tpu_custom_call.1} parent=51 // pred_fallthru
          _
        %s1740 = sand.u32 %s225, 1
        %s1741 = scalar_lea.sflag [#allocation4], %s1740
        %s1742 = sand.u32 %s225, 1
        %s1743 = scalar_lea.vmem [#allocation3], %s1742
        %s1744 = sand.u32 %s251, 1
        %s1745 = scalar_lea.sflag [#allocation6], %s1744
        %s1746 = sand.u32 %s251, 1
        %s1747 = scalar_lea.vmem [#allocation5], %s1746
        // Predicated region
        $region61: #{tpu_custom_call.1} parent=51 // pred_check
          %p1748 = pneg %p235
        $region62: #{tpu_custom_call.1} parent=51 // pred_check_branch
          %1750 = sbr.rel (%p1748) target = $region64
        $region63: #{tpu_custom_call.1} parent=51 // pred_region
          %s1752 = ssub.s32 16, 16
          %1753 = vsyncadd %s1741, %s1752
          %s1754 = smul.addr %s31, 16
          %s1755 = scalar_lea.hbm %s8, %s1754
          %s1757 = sshll.u32 %s1743, 4
          %s1758 = int_to_ptr.vmem [resolvable:$true] %s1757
          %1760 = dma.vmem_to_hbm [thread:$0]  %s1758, 16, %s1755, %s1741
        $region64: #{tpu_custom_call.1} parent=51 // pred_fallthru
          _
        // Predicated region
        $region65: #{tpu_custom_call.1} parent=51 // pred_check
          %p1761 = pneg %p261
        $region66: #{tpu_custom_call.1} parent=51 // pred_check_branch
          %1763 = sbr.rel (%p1761) target = $region68
        $region67: #{tpu_custom_call.1} parent=51 // pred_region
          %s1765 = ssub.s32 16, 16
          %1766 = vsyncadd %s1745, %s1765
          %s1767 = smul.addr %s31, 16
          %s1768 = scalar_lea.hbm %s9, %s1767
          %s1770 = sshll.u32 %s1747, 4
          %s1771 = int_to_ptr.vmem [resolvable:$true] %s1770
          %1773 = dma.vmem_to_hbm [thread:$0]  %s1771, 16, %s1768, %s1745
        $region68: #{tpu_custom_call.1} parent=51 // pred_fallthru
          _
      $region52: #{tpu_custom_call.1} parent=5 // pred_fallthru
        _
      %p1774 = scmp.le.s32.totalorder 2, %s22
      // Predicated region
      $region69: #{tpu_custom_call.1} parent=5 // pred_check
        %p1775 = pneg %p1774
      $region70: #{tpu_custom_call.1} parent=5 // pred_check_branch
        %1777 = sbr.rel (%p1775) target = $region72
      $region71: #{tpu_custom_call.1} parent=5 // pred_region
        %s1778 = ssub.s32 %s22, 2
        // Predicated region
        $region73: #{tpu_custom_call.1} parent=71 // pred_check
          %p1779 = pneg %p241
        $region74: #{tpu_custom_call.1} parent=71 // pred_check_branch
          %1781 = sbr.rel (%p1779) target = $region76
        $region75: #{tpu_custom_call.1} parent=71 // pred_region
          %s1782 = sand.u32 %s226, 1
          %s1783 = scalar_lea.sflag [#allocation4], %s1782
          %s1784 = sand.u32 %s226, 1
          %s1785 = scalar_lea.vmem [#allocation3], %s1784
          %1786 = dma.done %s1783, 16
        $region76: #{tpu_custom_call.1} parent=71 // pred_fallthru
          _
        // Predicated region
        $region77: #{tpu_custom_call.1} parent=71 // pred_check
          %p1787 = pneg %p267
        $region78: #{tpu_custom_call.1} parent=71 // pred_check_branch
          %1789 = sbr.rel (%p1787) target = $region80
        $region79: #{tpu_custom_call.1} parent=71 // pred_region
          %s1790 = sand.u32 %s252, 1
          %s1791 = scalar_lea.sflag [#allocation6], %s1790
          %s1792 = sand.u32 %s252, 1
          %s1793 = scalar_lea.vmem [#allocation5], %s1792
          %1794 = dma.done %s1791, 16
        $region80: #{tpu_custom_call.1} parent=71 // pred_fallthru
          _
      $region72: #{tpu_custom_call.1} parent=5 // pred_fallthru
        _
    $region6: #{tpu_custom_call.1} parent=1 // loop_footer
      %s26 = sadd.s32 1, %s22
    $region7: #{tpu_custom_call.1} parent=1 // loop_footer_branch
      %21 = sbr.rel target = $region3
    $region8: #{tpu_custom_call.1} parent=1 // loop_exit
      _
    %1795 = vsyncpa [#allocation4], 1
    %s1796 = scalar_lea.sflag [#allocation4], 1
    %1797 = vsyncpa %s1796, 1
    %1798 = vsyncpa [#allocation6], 1
    %s1799 = scalar_lea.sflag [#allocation6], 1
    %1800 = vsyncpa %s1799, 1

</llo_original>
